<compile_context>
chip_gen: v6e
topology: v6e:2x2x1
jax: 0.10.0
libtpu: 0.0.40
codegen_flags: <defaults>
</compile_context>

<pallas_src>
import functools

import jax
import jax.numpy as jnp
from jax.experimental import pallas as pl
from jax.experimental.pallas import tpu as pltpu


# ----------------------------------------------------------------------------
# helpers
# ----------------------------------------------------------------------------
def _round_up(x, m):
    return (x + m - 1) // m * m


def _vmem_capacity_bytes():
    try:
        info = pltpu.get_tpu_info()
        cap = getattr(info, "vmem_capacity_bytes", None)
        if cap:
            return int(cap)
    except Exception:
        pass
    return 64 * (1 << 20)          # conservative default (v7x per-TensorCore)


def _choose_tiling(n, vmem_cap):
    """n_pad is a multiple of 128 (lane dim of the A tile, K dim of the agg
    matmul).  tm is a multiple of 128 that divides n_pad, budgeted so the
    double-buffered int8 A tile takes <= ~1/4 of this generation's VMEM."""
    n_pad = _round_up(max(n, 128), 128)
    budget = vmem_cap // 4
    for tm in (1024, 512, 256, 128):
        if tm <= n_pad and n_pad % tm == 0 and 2 * tm * n_pad <= budget:
            return n_pad, tm
    # TODO(synk): graphs that fall through here need the K-blocked grid axis.
    return n_pad, 128


def build_adjacency_int8(edge_index, num_nodes):
    """Return (counts int8 [N,N], inv_deg f32 [N,1]) with counts[i,j] = #edges
    j->i.  Padding regions stay exact zeros (required for correctness)."""
    src = edge_index[0]
    dst = edge_index[1]
    counts = jnp.zeros((num_nodes, num_nodes), jnp.int32).at[dst, src].add(1)
    counts = jnp.minimum(counts, 127)              # int8 range (multigraphs)
    deg = jnp.clip(jnp.sum(counts, axis=1, keepdims=True), 1, None)
    inv_deg = 1.0 / deg.astype(jnp.float32)
    return counts.astype(jnp.int8), inv_deg


# ----------------------------------------------------------------------------
# fused two-layer kernel
# ----------------------------------------------------------------------------
def _fused_graphsage_kernel(x_hbm, a_ref, inv_ref, wp_ref, bp_ref,
                            wl_ref, wr_ref, bl_ref, o_ref,
                            act_ref, proj_ref, x_sem, *, tm):
    layer = pl.program_id(0)          # 0: conv1, 1: conv2
    tile = pl.program_id(1)           # node-row tile
    start = pl.multiple_of(tile * tm, tm)

    # Load x from HBM into the resident activation scratch exactly once
    # (manual DMA -> x never occupies a pipeline double-buffer).
    @pl.when((layer == 0) & (tile == 0))
    def _load_x():
        cp = pltpu.make_async_copy(x_hbm, act_ref, x_sem)
        cp.start()
        cp.wait()

    # Once per layer: SAGEConv(project=True) projection of ALL nodes,
    #   proj = relu(act @ Wp + bp), kept VMEM-resident for every row tile.
    @pl.when(tile == 0)
    def _project_all():
        p = jnp.dot(act_ref[...], wp_ref[0], preferred_element_type=jnp.float32)
        proj_ref[...] = jnp.maximum(p + bp_ref[0], 0.0).astype(proj_ref.dtype)

    # Mean aggregation over incoming edges for this row tile:
    # int8 edge counts -> bf16, MXU dot (f32 acc), then per-row 1/deg (f32).
    a_bf = a_ref[...].astype(jnp.float32).astype(jnp.bfloat16)
    agg = jnp.dot(a_bf, proj_ref[...], preferred_element_type=jnp.float32)
    agg = agg * inv_ref[...]

    # Root features of this row tile (x for conv1, h for conv2).
    root = act_ref[pl.ds(start, tm), :]

    # lin_l / lin_r as two MXU dots into one f32 accumulator (no concat).
    out = jnp.dot(agg.astype(jnp.bfloat16), wl_ref[0],
                  preferred_element_type=jnp.float32)
    out = out + jnp.dot(root, wr_ref[0], preferred_element_type=jnp.float32)
    out = out + bl_ref[0]

    @pl.when(layer == 0)
    def _finish_conv1():
        h = jnp.maximum(out, 0.0).astype(jnp.bfloat16)
        act_ref[pl.ds(start, tm), :] = h        # stash h for conv2
        o_ref[...] = h                          # overwritten by conv2 later

    @pl.when(layer == 1)
    def _finish_conv2():
        # F.normalize(out, p=2, dim=-1):  rsqrt(max(ss,1e-24)) == 1/max(||.||,1e-12)
        ss = jnp.sum(out * out, axis=-1, keepdims=True)
        inv = jax.lax.rsqrt(jnp.maximum(ss, 1e-24))
        o_ref[...] = jnp.maximum(out * inv, 0.0).astype(o_ref.dtype)


# ----------------------------------------------------------------------------
# wrapper: pad / pack operands, build the grid, call the kernel
# ----------------------------------------------------------------------------
def graphsage_forward(x, edge_index, params):
    n, in_c = x.shape
    hid_c = params["wl1"].shape[1]
    out_c = params["wl2"].shape[1]

    d = _round_up(max(in_c, hid_c, out_c), 128)   # uniform padded feature dim
    vmem_cap = _vmem_capacity_bytes()
    n_pad, tm = _choose_tiling(n, vmem_cap)
    t = n_pad // tm

    a_i8, inv_deg = build_adjacency_int8(edge_index, n)

    def pad2(m, r, c):
        return jnp.pad(m, ((0, r - m.shape[0]), (0, c - m.shape[1])))

    x_p = pad2(x, n_pad, d).astype(jnp.bfloat16)
    a_p = pad2(a_i8, n_pad, n_pad)                         # int8, zero padding
    inv_p = pad2(inv_deg, n_pad, 1).astype(jnp.float32)

    wp = jnp.stack([pad2(params["wp1"], d, d),
                    pad2(params["wp2"], d, d)]).astype(jnp.bfloat16)
    bp = jnp.stack([pad2(params["bp1"], 1, d),
                    pad2(params["bp2"], 1, d)]).astype(jnp.float32)
    wl = jnp.stack([pad2(params["wl1"], d, d),
                    pad2(params["wl2"], d, d)]).astype(jnp.bfloat16)
    wr = jnp.stack([pad2(params["wr1"], d, d),
                    pad2(params["wr2"], d, d)]).astype(jnp.bfloat16)
    bl = jnp.stack([pad2(params["bl1"], 1, d),
                    pad2(params["bl2"], 1, d)]).astype(jnp.float32)

    grid = (2, t)                                  # (layer, row tile)
    in_specs = [
        pl.BlockSpec(memory_space=pl.ANY),                    # x (raw HBM)
        pl.BlockSpec((tm, n_pad), lambda l, i: (i, 0)),       # A counts tile
        pl.BlockSpec((tm, 1),     lambda l, i: (i, 0)),       # 1/deg tile
        pl.BlockSpec((1, d, d),   lambda l, i: (l, 0, 0)),    # Wp[layer]
        pl.BlockSpec((1, 1, d),   lambda l, i: (l, 0, 0)),    # bp[layer]
        pl.BlockSpec((1, d, d),   lambda l, i: (l, 0, 0)),    # Wl[layer]
        pl.BlockSpec((1, d, d),   lambda l, i: (l, 0, 0)),    # Wr[layer]
        pl.BlockSpec((1, 1, d),   lambda l, i: (l, 0, 0)),    # bl[layer]
    ]
    out_specs = pl.BlockSpec((tm, d), lambda l, i: (i, 0))    # conv2 overwrites
    scratch = [pltpu.VMEM((n_pad, d), jnp.bfloat16),   # act: x then h
               pltpu.VMEM((n_pad, d), jnp.bfloat16),   # per-layer projection
               pltpu.SemaphoreType.DMA]                # x load semaphore

    flops = 2 * (2 * n_pad * d * d                 # projection
                 + 2 * n_pad * n_pad * d           # mean aggregation
                 + 2 * 2 * n_pad * d * d)          # lin_l + lin_r
    bytes_accessed = (2 * n_pad * n_pad            # int8 A, streamed per layer
                      + n_pad * d * 2              # x (bf16, once)
                      + 2 * n_pad * 4              # 1/deg per layer
                      + (wp.size + wl.size + wr.size) * 2
                      + (bp.size + bl.size) * 4
                      + 2 * n_pad * d * 2)         # bf16 output slab per layer
    cost = pl.CostEstimate(flops=flops, transcendentals=n_pad,
                           bytes_accessed=int(bytes_accessed))

    vmem_need = (2 * tm * n_pad                    # int8 A tile, 2 bufs
                 + 2 * tm * 4                      # 1/deg tiles
                 + 2 * n_pad * d * 2               # act + proj scratch (bf16)
                 + 2 * tm * d * 2                  # out tile, 2 bufs (bf16)
                 + 2 * 3 * d * d * 2               # Wp/Wl/Wr blocks, 2 bufs
                 + 4 * 2 * 2 * d * 4               # bias blocks
                 + (4 << 20))                      # headroom
    vmem_limit = int(max(32 << 20, min(vmem_need, vmem_cap - (8 << 20))))

    out_pad = pl.pallas_call(
        functools.partial(_fused_graphsage_kernel, tm=tm),
        out_shape=jax.ShapeDtypeStruct((n_pad, d), jnp.bfloat16),
        grid_spec=pltpu.PrefetchScalarGridSpec(
            num_scalar_prefetch=0,
            grid=grid,
            in_specs=in_specs,
            out_specs=out_specs,
            scratch_shapes=scratch),
        compiler_params=pltpu.CompilerParams(
            # Row-tile axis MUST stay sequential: layer 2 consumes VMEM-resident
            # h/proj written by earlier grid steps.
            dimension_semantics=("arbitrary", "arbitrary"),
            vmem_limit_bytes=vmem_limit),
        cost_estimate=cost,
    )(x_p, a_p, inv_p, wp, bp, wl, wr, bl)

    return out_pad[:n, :out_c].astype(jnp.float32)


# ----------------------------------------------------------------------------
# parameters + pure-JAX reference (f32) for validation
# ----------------------------------------------------------------------------
def init_params(key, in_channels, hidden_channels, out_channels):
    ks = jax.random.split(key, 10)
    u = lambda k, shape, fan: jax.random.uniform(
        k, shape, jnp.float32, -1.0, 1.0) / jnp.sqrt(float(fan))
    return {
        "wp1": u(ks[0], (in_channels, in_channels), in_channels),
        "bp1": u(ks[1], (1, in_channels), in_channels),
        "wl1": u(ks[2], (in_channels, hidden_channels), in_channels),
        "bl1": u(ks[3], (1, hidden_channels), in_channels),
        "wr1": u(ks[4], (in_channels, hidden_channels), in_channels),
        "wp2": u(ks[5], (hidden_channels, hidden_channels), hidden_channels),
        "bp2": u(ks[6], (1, hidden_channels), hidden_channels),
        "wl2": u(ks[7], (hidden_channels, out_channels), hidden_channels),
        "bl2": u(ks[8], (1, out_channels), hidden_channels),
        "wr2": u(ks[9], (hidden_channels, out_channels), hidden_channels),
    }


def _reference_forward(x, edge_index, params):
    counts, inv_deg = build_adjacency_int8(edge_index, x.shape[0])
    a = counts.astype(jnp.float32) * inv_deg

    def conv(xin, wp, bp, wl, bl, wr, normalize):
        proj = jnp.maximum(xin @ wp + bp, 0.0)
        agg = a @ proj
        out = agg @ wl + bl + xin @ wr
        if normalize:
            nrm = jnp.sqrt(jnp.sum(out * out, axis=-1, keepdims=True))
            out = out / jnp.maximum(nrm, 1e-12)
        return jnp.maximum(out, 0.0)

    h = conv(x, params["wp1"], params["bp1"], params["wl1"], params["bl1"],
             params["wr1"], False)
    return conv(h, params["wp2"], params["bp2"], params["wl2"], params["bl2"],
                params["wr2"], True)


# ----------------------------------------------------------------------------
if __name__ == "__main__":
    N_NODES, N_EDGES = 64, 256
    IN_C, HID_C, OUT_C = 16, 32, 16

    key = jax.random.PRNGKey(0)
    k_x, k_e, k_p = jax.random.split(key, 3)

    x = jax.random.normal(k_x, (N_NODES, IN_C), jnp.float32)
    edge_index = jax.random.randint(k_e, (2, N_EDGES), 0, N_NODES, jnp.int32)
    params = init_params(k_p, IN_C, HID_C, OUT_C)

    out = graphsage_forward(x, edge_index, params)
    jax.block_until_ready(out)
    assert out.shape == (N_NODES, OUT_C)

    # Loose tolerance: kernel runs the data path in bf16 (f32 accumulation).
    ref = _reference_forward(x, edge_index, params)
    err = float(jnp.max(jnp.abs(out - ref)))
    assert err < 0.1, f"kernel/reference mismatch: max abs err = {err}"

    print("KERNEL_OK")
</pallas_src>

<mosaic_0001>
module attributes {stable_mosaic.version = 11 : i64} {
  func.func @_fused_graphsage_kernel(%arg0: i32, %arg1: i32, %arg2: memref<128x128xbf16, #tpu.memory_space<any>>, %arg3: memref<128x128xi8, #tpu.memory_space<vmem>>, %arg4: memref<128x1xf32, #tpu.memory_space<vmem>>, %arg5: memref<1x128x128xbf16, #tpu.memory_space<vmem>>, %arg6: memref<1x1x128xf32, #tpu.memory_space<vmem>>, %arg7: memref<1x128x128xbf16, #tpu.memory_space<vmem>>, %arg8: memref<1x128x128xbf16, #tpu.memory_space<vmem>>, %arg9: memref<1x1x128xf32, #tpu.memory_space<vmem>>, %arg10: memref<128x128xbf16, #tpu.memory_space<vmem>>, %arg11: memref<128x128xbf16, #tpu.memory_space<vmem>>, %arg12: memref<128x128xbf16, #tpu.memory_space<vmem>>, %arg13: memref<!tpu.dma_semaphore, #tpu.memory_space<semaphore_mem>>) attributes {dimension_semantics = [#tpu.dimension_semantics<arbitrary>, #tpu.dimension_semantics<arbitrary>], iteration_bounds = array<i64: 2, 1>, scalar_prefetch = 0 : i64, scratch_operands = 3 : i64, tpu.core_type = #tpu.core_type<tc>, window_params = [{}, {transform_indices = @transform_1, window_bounds = array<i64: 128, 128>}, {transform_indices = @transform_2, window_bounds = array<i64: 128, 1>}, {transform_indices = @transform_3, window_bounds = array<i64: 1, 128, 128>}, {transform_indices = @transform_4, window_bounds = array<i64: 1, 1, 128>}, {transform_indices = @transform_5, window_bounds = array<i64: 1, 128, 128>}, {transform_indices = @transform_6, window_bounds = array<i64: 1, 128, 128>}, {transform_indices = @transform_7, window_bounds = array<i64: 1, 1, 128>}, {transform_indices = @transform_8, window_bounds = array<i64: 128, 128>}]} {
    %c128_i32 = arith.constant 128 : i32
    %0 = arith.muli %arg1, %c128_i32 : i32
    %1 = tpu.assume_multiple %0, 128 : i32
    %c0_i32 = arith.constant 0 : i32
    %2 = arith.cmpi eq, %arg0, %c0_i32 : i32
    %c0_i32_0 = arith.constant 0 : i32
    %3 = arith.cmpi eq, %arg1, %c0_i32_0 : i32
    %4 = arith.andi %2, %3 : i1
    %5 = arith.extui %4 : i1 to i32
    %c0_i32_1 = arith.constant 0 : i32
    %6 = arith.cmpi ne, %5, %c0_i32_1 : i32
    scf.if %6 {
      tpu.enqueue_dma source(%arg2 : memref<128x128xbf16, #tpu.memory_space<any>>) target(%arg11 : memref<128x128xbf16, #tpu.memory_space<vmem>>) target_semaphore(%arg13 : memref<!tpu.dma_semaphore, #tpu.memory_space<semaphore_mem>>)
      tpu.wait_dma2 semaphore(%arg13 : memref<!tpu.dma_semaphore, #tpu.memory_space<semaphore_mem>>) src(%arg2 : memref<128x128xbf16, #tpu.memory_space<any>>) dst(%arg11 : memref<128x128xbf16, #tpu.memory_space<vmem>>)
    } else {
    }
    %c0_i32_2 = arith.constant 0 : i32
    %7 = arith.cmpi eq, %arg1, %c0_i32_2 : i32
    %8 = arith.extui %7 : i1 to i32
    %c0_i32_3 = arith.constant 0 : i32
    %9 = arith.cmpi ne, %8, %c0_i32_3 : i32
    scf.if %9 {
      %c0_24 = arith.constant 0 : index
      %c0_25 = arith.constant 0 : index
      %38 = vector.load %arg11[%c0_24, %c0_25] : memref<128x128xbf16, #tpu.memory_space<vmem>>, vector<128x128xbf16>
      %c0_26 = arith.constant 0 : index
      %c0_27 = arith.constant 0 : index
      %c0_28 = arith.constant 0 : index
      %39 = vector.load %arg5[%c0_26, %c0_27, %c0_28] : memref<1x128x128xbf16, #tpu.memory_space<vmem>>, vector<1x128x128xbf16>
      %40 = vector.shape_cast %39 : vector<1x128x128xbf16> to vector<128x128xbf16>
      %cst_29 = arith.constant dense<0.000000e+00> : vector<128x128xf32>
      %41 = tpu.matmul %38, %40, %cst_29 {dimension_numbers = #tpu.dot_dimension_numbers<[1], [0], [0], [1], [0, 0, 1, 1], [], []>} : vector<128x128xbf16>, vector<128x128xbf16>, vector<128x128xf32> -> vector<128x128xf32>
      %c0_30 = arith.constant 0 : index
      %c0_31 = arith.constant 0 : index
      %c0_32 = arith.constant 0 : index
      %42 = vector.load %arg6[%c0_30, %c0_31, %c0_32] : memref<1x1x128xf32, #tpu.memory_space<vmem>>, vector<1x1x128xf32>
      %43 = vector.shape_cast %42 : vector<1x1x128xf32> to vector<1x128xf32>
      %44 = vector.broadcast %43 : vector<1x128xf32> to vector<128x128xf32>
      %45 = arith.addf %41, %44 : vector<128x128xf32>
      %cst_33 = arith.constant 0.000000e+00 : f32
      %46 = vector.broadcast %cst_33 : f32 to vector<128x128xf32>
      %47 = arith.maximumf %45, %46 : vector<128x128xf32>
      %48 = arith.truncf %47 : vector<128x128xf32> to vector<128x128xbf16>
      %c0_34 = arith.constant 0 : index
      %c0_35 = arith.constant 0 : index
      %49 = vector.load %arg12[%c0_34, %c0_35] : memref<128x128xbf16, #tpu.memory_space<vmem>>, vector<128x128xbf16>
      tpu.vector_store %arg12[%c0_34, %c0_35], %48 {strides = array<i32>} : memref<128x128xbf16, #tpu.memory_space<vmem>>, vector<128x128xbf16>,
    } else {
    }
    %c0 = arith.constant 0 : index
    %c0_4 = arith.constant 0 : index
    %10 = vector.load %arg3[%c0, %c0_4] : memref<128x128xi8, #tpu.memory_space<vmem>>, vector<128x128xi8>
    %11 = arith.sitofp %10 : vector<128x128xi8> to vector<128x128xf32>
    %12 = arith.truncf %11 : vector<128x128xf32> to vector<128x128xbf16>
    %c0_5 = arith.constant 0 : index
    %c0_6 = arith.constant 0 : index
    %13 = vector.load %arg12[%c0_5, %c0_6] : memref<128x128xbf16, #tpu.memory_space<vmem>>, vector<128x128xbf16>
    %cst = arith.constant dense<0.000000e+00> : vector<128x128xf32>
    %14 = tpu.matmul %12, %13, %cst {dimension_numbers = #tpu.dot_dimension_numbers<[1], [0], [0], [1], [0, 0, 1, 1], [], []>} : vector<128x128xbf16>, vector<128x128xbf16>, vector<128x128xf32> -> vector<128x128xf32>
    %c0_7 = arith.constant 0 : index
    %c0_8 = arith.constant 0 : index
    %15 = vector.load %arg4[%c0_7, %c0_8] : memref<128x1xf32, #tpu.memory_space<vmem>>, vector<128x1xf32>
    %16 = vector.broadcast %15 : vector<128x1xf32> to vector<128x128xf32>
    %17 = arith.mulf %14, %16 : vector<128x128xf32>
    %18 = arith.index_cast %1 : i32 to index
    %c0_9 = arith.constant 0 : index
    %19 = vector.load %arg11[%18, %c0_9] : memref<128x128xbf16, #tpu.memory_space<vmem>>, vector<128x128xbf16>
    %20 = arith.truncf %17 : vector<128x128xf32> to vector<128x128xbf16>
    %c0_10 = arith.constant 0 : index
    %c0_11 = arith.constant 0 : index
    %c0_12 = arith.constant 0 : index
    %21 = vector.load %arg7[%c0_10, %c0_11, %c0_12] : memref<1x128x128xbf16, #tpu.memory_space<vmem>>, vector<1x128x128xbf16>
    %22 = vector.shape_cast %21 : vector<1x128x128xbf16> to vector<128x128xbf16>
    %cst_13 = arith.constant dense<0.000000e+00> : vector<128x128xf32>
    %23 = tpu.matmul %20, %22, %cst_13 {dimension_numbers = #tpu.dot_dimension_numbers<[1], [0], [0], [1], [0, 0, 1, 1], [], []>} : vector<128x128xbf16>, vector<128x128xbf16>, vector<128x128xf32> -> vector<128x128xf32>
    %c0_14 = arith.constant 0 : index
    %c0_15 = arith.constant 0 : index
    %c0_16 = arith.constant 0 : index
    %24 = vector.load %arg8[%c0_14, %c0_15, %c0_16] : memref<1x128x128xbf16, #tpu.memory_space<vmem>>, vector<1x128x128xbf16>
    %25 = vector.shape_cast %24 : vector<1x128x128xbf16> to vector<128x128xbf16>
    %cst_17 = arith.constant dense<0.000000e+00> : vector<128x128xf32>
    %26 = tpu.matmul %19, %25, %cst_17 {dimension_numbers = #tpu.dot_dimension_numbers<[1], [0], [0], [1], [0, 0, 1, 1], [], []>} : vector<128x128xbf16>, vector<128x128xbf16>, vector<128x128xf32> -> vector<128x128xf32>
    %27 = arith.addf %23, %26 : vector<128x128xf32>
    %c0_18 = arith.constant 0 : index
    %c0_19 = arith.constant 0 : index
    %c0_20 = arith.constant 0 : index
    %28 = vector.load %arg9[%c0_18, %c0_19, %c0_20] : memref<1x1x128xf32, #tpu.memory_space<vmem>>, vector<1x1x128xf32>
    %29 = vector.shape_cast %28 : vector<1x1x128xf32> to vector<1x128xf32>
    %30 = vector.broadcast %29 : vector<1x128xf32> to vector<128x128xf32>
    %31 = arith.addf %27, %30 : vector<128x128xf32>
    %c0_i32_21 = arith.constant 0 : i32
    %32 = arith.cmpi eq, %arg0, %c0_i32_21 : i32
    %33 = arith.extui %32 : i1 to i32
    %c0_i32_22 = arith.constant 0 : i32
    %34 = arith.cmpi ne, %33, %c0_i32_22 : i32
    scf.if %34 {
      %cst_24 = arith.constant 0.000000e+00 : f32
      %38 = vector.broadcast %cst_24 : f32 to vector<128x128xf32>
      %39 = arith.maximumf %31, %38 : vector<128x128xf32>
      %40 = arith.truncf %39 : vector<128x128xf32> to vector<128x128xbf16>
      %41 = arith.index_cast %1 : i32 to index
      %c0_25 = arith.constant 0 : index
      %42 = vector.load %arg11[%41, %c0_25] : memref<128x128xbf16, #tpu.memory_space<vmem>>, vector<128x128xbf16>
      tpu.vector_store %arg11[%41, %c0_25], %40 {strides = array<i32>} : memref<128x128xbf16, #tpu.memory_space<vmem>>, vector<128x128xbf16>,
      %c0_26 = arith.constant 0 : index
      %c0_27 = arith.constant 0 : index
      %43 = vector.load %arg10[%c0_26, %c0_27] : memref<128x128xbf16, #tpu.memory_space<vmem>>, vector<128x128xbf16>
      tpu.vector_store %arg10[%c0_26, %c0_27], %40 {strides = array<i32>} : memref<128x128xbf16, #tpu.memory_space<vmem>>, vector<128x128xbf16>,
    } else {
    }
    %c1_i32 = arith.constant 1 : i32
    %35 = arith.cmpi eq, %arg0, %c1_i32 : i32
    %36 = arith.extui %35 : i1 to i32
    %c0_i32_23 = arith.constant 0 : i32
    %37 = arith.cmpi ne, %36, %c0_i32_23 : i32
    scf.if %37 {
      %38 = arith.mulf %31, %31 : vector<128x128xf32>
      %cst_24 = arith.constant dense<0.000000e+00> : vector<128xf32>
      %39 = vector.multi_reduction <add>, %38, %cst_24 [1] : vector<128x128xf32> to vector<128xf32>
      %40 = vector.shape_cast %39 : vector<128xf32> to vector<128x1xf32>
      %cst_25 = arith.constant 1.000000e-24 : f32
      %41 = vector.broadcast %cst_25 : f32 to vector<128x1xf32>
      %42 = arith.maximumf %40, %41 : vector<128x1xf32>
      %43 = math.rsqrt %42 : vector<128x1xf32>
      %44 = vector.broadcast %43 : vector<128x1xf32> to vector<128x128xf32>
      %45 = arith.mulf %31, %44 : vector<128x128xf32>
      %cst_26 = arith.constant 0.000000e+00 : f32
      %46 = vector.broadcast %cst_26 : f32 to vector<128x128xf32>
      %47 = arith.maximumf %45, %46 : vector<128x128xf32>
      %48 = arith.truncf %47 : vector<128x128xf32> to vector<128x128xbf16>
      %c0_27 = arith.constant 0 : index
      %c0_28 = arith.constant 0 : index
      %49 = vector.load %arg10[%c0_27, %c0_28] : memref<128x128xbf16, #tpu.memory_space<vmem>>, vector<128x128xbf16>
      tpu.vector_store %arg10[%c0_27, %c0_28], %48 {strides = array<i32>} : memref<128x128xbf16, #tpu.memory_space<vmem>>, vector<128x128xbf16>,
    } else {
    }
    return
  }
  func.func @transform_1(%arg0: i32, %arg1: i32) -> (i32, i32) {
    %c0_i32 = arith.constant 0 : i32
    %c0_i32_0 = arith.constant 0 : i32
    return %arg1, %c0_i32 : i32, i32
  }
  func.func @transform_2(%arg0: i32, %arg1: i32) -> (i32, i32) {
    %c0_i32 = arith.constant 0 : i32
    %c0_i32_0 = arith.constant 0 : i32
    return %arg1, %c0_i32 : i32, i32
  }
  func.func @transform_3(%arg0: i32, %arg1: i32) -> (i32, i32, i32) {
    %c0_i32 = arith.constant 0 : i32
    %c0_i32_0 = arith.constant 0 : i32
    %c0_i32_1 = arith.constant 0 : i32
    return %arg0, %c0_i32, %c0_i32_0 : i32, i32, i32
  }
  func.func @transform_4(%arg0: i32, %arg1: i32) -> (i32, i32, i32) {
    %c0_i32 = arith.constant 0 : i32
    %c0_i32_0 = arith.constant 0 : i32
    %c0_i32_1 = arith.constant 0 : i32
    return %arg0, %c0_i32, %c0_i32_0 : i32, i32, i32
  }
  func.func @transform_5(%arg0: i32, %arg1: i32) -> (i32, i32, i32) {
    %c0_i32 = arith.constant 0 : i32
    %c0_i32_0 = arith.constant 0 : i32
    %c0_i32_1 = arith.constant 0 : i32
    return %arg0, %c0_i32, %c0_i32_0 : i32, i32, i32
  }
  func.func @transform_6(%arg0: i32, %arg1: i32) -> (i32, i32, i32) {
    %c0_i32 = arith.constant 0 : i32
    %c0_i32_0 = arith.constant 0 : i32
    %c0_i32_1 = arith.constant 0 : i32
    return %arg0, %c0_i32, %c0_i32_0 : i32, i32, i32
  }
  func.func @transform_7(%arg0: i32, %arg1: i32) -> (i32, i32, i32) {
    %c0_i32 = arith.constant 0 : i32
    %c0_i32_0 = arith.constant 0 : i32
    %c0_i32_1 = arith.constant 0 : i32
    return %arg0, %c0_i32, %c0_i32_0 : i32, i32, i32
  }
  func.func @transform_8(%arg0: i32, %arg1: i32) -> (i32, i32) {
    %c0_i32 = arith.constant 0 : i32
    %c0_i32_0 = arith.constant 0 : i32
    return %arg1, %c0_i32 : i32, i32
  }
}

</mosaic_0001>

<llo_original>
// kernel: tpu_custom_call.1
$region0: #{tpu_custom_call.1}
  #allocation0 [shape = 'u32[]', space=smem, size = 0x4, offset = 0x4, fixed_abs, tag = 'smem constant byte address 0x4 - core index']
  #allocation1 [shape = 'u32[144,128]{1,0:T(1,128)}', space=vmem, size = 0x12000, scoped, tag = 'internal scratch']
  #allocation2 [shape = 'bf16[128,128]{1,0:T(8,128)(2,1)}', space=vmem, size = 0x8000, scoped, tag = 'scratch operand']
  #allocation3 [shape = 'bf16[128,128]{1,0:T(8,128)(2,1)}', space=vmem, size = 0x8000, scoped, tag = 'scratch operand']
  #allocation4 [shape = 's32[1]{0}', space=sflag, size = 0x4, scoped, tag = 'scratch operand']
  #allocation12 [shape = 's32[]', space=sflag, size = 0x4, offset = 0, fixed_abs, tag = 'sflag constant byte address 0x0 - dummy sync flag']
  #allocation13 [shape = 's32[]', space=sflag, size = 0x4, offset = 0, fixed_abs, tag = 'sflag constant byte address 0x0 - dummy sync flag']
  #allocation14 [shape = 'u32[]', space=smem, size = 0x4, offset = 0x44, fixed_abs, tag = 'smem constant byte address 0x44 - assertion arg 0']
  #allocation15 [shape = 'u32[]', space=smem, size = 0x4, offset = 0x48, fixed_abs, tag = 'smem constant byte address 0x48 - assertion arg 1']
  %s0 = inlined_call_operand.hbm [shape: bf16[128,128], index: 0, kind: input, shape index: {}]
  %s1 = inlined_call_operand.hbm [shape: s8[128,128], index: 1, kind: input, shape index: {}]
  %s2 = inlined_call_operand.vmem [shape: f32[128,1], index: 2, kind: input, shape index: {}]
  %s3 = inlined_call_operand.vmem [shape: bf16[2,128,128], index: 3, kind: input, shape index: {}]
  %s4 = inlined_call_operand.vmem [shape: f32[2,1,128], index: 4, kind: input, shape index: {}]
  %s5 = inlined_call_operand.hbm [shape: bf16[2,128,128], index: 5, kind: input, shape index: {}]
  %s6 = inlined_call_operand.hbm [shape: bf16[2,128,128], index: 6, kind: input, shape index: {}]
  %s7 = inlined_call_operand.vmem [shape: f32[2,1,128], index: 7, kind: input, shape index: {}]
  %s8 = inlined_call_operand.hbm [shape: bf16[128,128], index: 8, kind: output, shape index: {}]
  %s9 = sld [smem:[#allocation0]]
  $region93: #{tpu_custom_call.1} parent=0
    _
  %s11 = ssub.s32 1, %s9
  %s12 = scalar_select 0, %s11, %s9
  $region1: #{tpu_custom_call.1} parent=0
    #allocation5 [shape = 'u8[16384]{0}', space=vmem, size = 0x4000, scoped, tag = 'input window, operand 1, single buffered']
    #allocation6 [shape = 's32[2]{0}', space=sflag, size = 0x8, scoped, tag = 'scoped memory for tpu_custom_call.1']
    #allocation7 [shape = 's32[2]{0}', space=sflag, size = 0x8, scoped, tag = 'scoped memory for tpu_custom_call.1']
    #allocation8 [shape = 'u8[65536]{0}', space=vmem, size = 0x10000, scoped, tag = 'input window, operand 5']
    #allocation9 [shape = 's32[2]{0}', space=sflag, size = 0x8, scoped, tag = 'scoped memory for tpu_custom_call.1']
    #allocation10 [shape = 'u8[65536]{0}', space=vmem, size = 0x10000, scoped, tag = 'input window, operand 6']
    #allocation11 [shape = 'u8[32768]{0}', space=vmem, size = 0x8000, scoped, tag = 'output window, operand 0, single buffered']
    %13 = vsyncpa [#allocation6], 0
    %14 = vsyncpa [#allocation9], 0
    %s15 = scalar_lea.sflag [#allocation9], 1
    %16 = vsyncpa %s15, 0
    %17 = vsyncpa [#allocation7], 0
    loop: start=0, step=1, limit=4
    $region2: #{tpu_custom_call.1} parent=1 // loop_pre_header
      _
    $region3: #{tpu_custom_call.1} parent=1 // loop_header
      %s19 = sphi 0, %s23
      %p20 = scmp.ge.s32.totalorder %s19, 4
      %s26 = sphi 0, %s38
      %s27 = sphi 0, %s34
      %s28 = sphi 0, %s26
      %s29 = sphi 0, %s27
      %s30 = sphi 0, %s28
      %s31 = sphi 0, %s29
      %s41 = sphi 0, %s43
      %s44 = sphi 0, %s41
      %s45 = sphi 0, %s44
      %s61 = sphi 0, %s45
      %s67 = sphi 0, %s69
      %s70 = sphi 0, %s67
      %s71 = sphi 0, %s70
      %s87 = sphi 0, %s71
      %s93 = sphi 0, %s95
      %s96 = sphi 0, %s93
      %s97 = sphi 0, %s96
      %s113 = sphi 0, %s97
      %s119 = sphi 0, %s121
      %s122 = sphi 0, %s119
      %s123 = sphi 0, %s122
      %s139 = sphi 0, %s123
      %s145 = sphi 0, %s147
      %s148 = sphi 0, %s145
      %s149 = sphi 0, %s148
      %s165 = sphi 0, %s149
      %s171 = sphi 0, %s173
      %s174 = sphi 0, %s171
      %s175 = sphi 0, %s174
      %s191 = sphi 0, %s175
      %s197 = sphi 0, %s199
      %s200 = sphi 0, %s197
      %s201 = sphi 0, %s200
      %s217 = sphi 0, %s201
      %s223 = sphi 0, %s225
      %s226 = sphi 0, %s223
      %s227 = sphi 0, %s226
      %s243 = sphi 0, %s227
    $region4: #{tpu_custom_call.1} parent=1 // loop_header_branch
      %22 = sbr.rel (%p20) target = $region8
    $region5: #{tpu_custom_call.1} parent=1 // loop_body
      %s24 = ssub.s32 %s19, 1
      %s25 = ssub.s32 %s19, 2
      %s32 = sadd.s32 1, %s27
      %p33 = scmp.ge.s32.totalorder %s32, 1
      %s34 = scalar_select %p33, 0, %s32
      %s35 = sadd.s32 1, %s26
      %s36 = scalar_select %p33, %s35, %s26
      %p37 = scmp.ge.s32.totalorder %s36, 2
      %s38 = scalar_select %p37, 0, %s36
      %s39 = ssub.s32 %s27, %s34
      %p40 = scmp.eq.s32.totalorder %s39, 0
      %s42 = sadd.s32 %s41, 1
      %s43 = scalar_select %p40, %s41, %s42
      %p46 = pneg %p40
      %p47 = scmp.eq.s32.totalorder %s19, 1
      %p48 = por %p46, %p47
      %p49 = scmp.ne.s32.totalorder %s41, %s44
      %p50 = scmp.eq.s32.totalorder %s19, 0
      %p51 = por %p49, %p50
      %p52 = scmp.ne.s32.totalorder %s41, %s44
      %p53 = scmp.eq.s32.totalorder %s24, 1
      %p54 = por %p52, %p53
      %p55 = scmp.ne.s32.totalorder %s44, %s45
      %p56 = scmp.eq.s32.totalorder %s24, 0
      %p57 = por %p55, %p56
      %p58 = scmp.ne.s32.totalorder %s44, %s45
      %p59 = scmp.eq.s32.totalorder %s25, 1
      %p60 = por %p58, %p59
      %p62 = scmp.ne.s32.totalorder %s45, %s61
      %p63 = scmp.eq.s32.totalorder %s25, 0
      %p64 = por %p62, %p63
      %s65 = ssub.s32 %s27, %s34
      %p66 = scmp.eq.s32.totalorder %s65, 0
      %s68 = sadd.s32 %s67, 1
      %s69 = scalar_select %p66, %s67, %s68
      %p72 = pneg %p66
      %p73 = scmp.eq.s32.totalorder %s19, 1
      %p74 = por %p72, %p73
      %p75 = scmp.ne.s32.totalorder %s67, %s70
      %p76 = scmp.eq.s32.totalorder %s19, 0
      %p77 = por %p75, %p76
      %p78 = scmp.ne.s32.totalorder %s67, %s70
      %p79 = scmp.eq.s32.totalorder %s24, 1
      %p80 = por %p78, %p79
      %p81 = scmp.ne.s32.totalorder %s70, %s71
      %p82 = scmp.eq.s32.totalorder %s24, 0
      %p83 = por %p81, %p82
      %p84 = scmp.ne.s32.totalorder %s70, %s71
      %p85 = scmp.eq.s32.totalorder %s25, 1
      %p86 = por %p84, %p85
      %p88 = scmp.ne.s32.totalorder %s71, %s87
      %p89 = scmp.eq.s32.totalorder %s25, 0
      %p90 = por %p88, %p89
      %s91 = ssub.s32 %s26, %s38
      %p92 = scmp.eq.s32.totalorder %s91, 0
      %s94 = sadd.s32 %s93, 1
      %s95 = scalar_select %p92, %s93, %s94
      %p98 = pneg %p92
      %p99 = scmp.eq.s32.totalorder %s19, 1
      %p100 = por %p98, %p99
      %p101 = scmp.ne.s32.totalorder %s93, %s96
      %p102 = scmp.eq.s32.totalorder %s19, 0
      %p103 = por %p101, %p102
      %p104 = scmp.ne.s32.totalorder %s93, %s96
      %p105 = scmp.eq.s32.totalorder %s24, 1
      %p106 = por %p104, %p105
      %p107 = scmp.ne.s32.totalorder %s96, %s97
      %p108 = scmp.eq.s32.totalorder %s24, 0
      %p109 = por %p107, %p108
      %p110 = scmp.ne.s32.totalorder %s96, %s97
      %p111 = scmp.eq.s32.totalorder %s25, 1
      %p112 = por %p110, %p111
      %p114 = scmp.ne.s32.totalorder %s97, %s113
      %p115 = scmp.eq.s32.totalorder %s25, 0
      %p116 = por %p114, %p115
      %s117 = ssub.s32 %s26, %s38
      %p118 = scmp.eq.s32.totalorder %s117, 0
      %s120 = sadd.s32 %s119, 1
      %s121 = scalar_select %p118, %s119, %s120
      %p124 = pneg %p118
      %p125 = scmp.eq.s32.totalorder %s19, 1
      %p126 = por %p124, %p125
      %p127 = scmp.ne.s32.totalorder %s119, %s122
      %p128 = scmp.eq.s32.totalorder %s19, 0
      %p129 = por %p127, %p128
      %p130 = scmp.ne.s32.totalorder %s119, %s122
      %p131 = scmp.eq.s32.totalorder %s24, 1
      %p132 = por %p130, %p131
      %p133 = scmp.ne.s32.totalorder %s122, %s123
      %p134 = scmp.eq.s32.totalorder %s24, 0
      %p135 = por %p133, %p134
      %p136 = scmp.ne.s32.totalorder %s122, %s123
      %p137 = scmp.eq.s32.totalorder %s25, 1
      %p138 = por %p136, %p137
      %p140 = scmp.ne.s32.totalorder %s123, %s139
      %p141 = scmp.eq.s32.totalorder %s25, 0
      %p142 = por %p140, %p141
      %s143 = ssub.s32 %s26, %s38
      %p144 = scmp.eq.s32.totalorder %s143, 0
      %s146 = sadd.s32 %s145, 1
      %s147 = scalar_select %p144, %s145, %s146
      %p150 = pneg %p144
      %p151 = scmp.eq.s32.totalorder %s19, 1
      %p152 = por %p150, %p151
      %p153 = scmp.ne.s32.totalorder %s145, %s148
      %p154 = scmp.eq.s32.totalorder %s19, 0
      %p155 = por %p153, %p154
      %p156 = scmp.ne.s32.totalorder %s145, %s148
      %p157 = scmp.eq.s32.totalorder %s24, 1
      %p158 = por %p156, %p157
      %p159 = scmp.ne.s32.totalorder %s148, %s149
      %p160 = scmp.eq.s32.totalorder %s24, 0
      %p161 = por %p159, %p160
      %p162 = scmp.ne.s32.totalorder %s148, %s149
      %p163 = scmp.eq.s32.totalorder %s25, 1
      %p164 = por %p162, %p163
      %p166 = scmp.ne.s32.totalorder %s149, %s165
      %p167 = scmp.eq.s32.totalorder %s25, 0
      %p168 = por %p166, %p167
      %s169 = ssub.s32 %s26, %s38
      %p170 = scmp.eq.s32.totalorder %s169, 0
      %s172 = sadd.s32 %s171, 1
      %s173 = scalar_select %p170, %s171, %s172
      %p176 = pneg %p170
      %p177 = scmp.eq.s32.totalorder %s19, 1
      %p178 = por %p176, %p177
      %p179 = scmp.ne.s32.totalorder %s171, %s174
      %p180 = scmp.eq.s32.totalorder %s19, 0
      %p181 = por %p179, %p180
      %p182 = scmp.ne.s32.totalorder %s171, %s174
      %p183 = scmp.eq.s32.totalorder %s24, 1
      %p184 = por %p182, %p183
      %p185 = scmp.ne.s32.totalorder %s174, %s175
      %p186 = scmp.eq.s32.totalorder %s24, 0
      %p187 = por %p185, %p186
      %p188 = scmp.ne.s32.totalorder %s174, %s175
      %p189 = scmp.eq.s32.totalorder %s25, 1
      %p190 = por %p188, %p189
      %p192 = scmp.ne.s32.totalorder %s175, %s191
      %p193 = scmp.eq.s32.totalorder %s25, 0
      %p194 = por %p192, %p193
      %s195 = ssub.s32 %s26, %s38
      %p196 = scmp.eq.s32.totalorder %s195, 0
      %s198 = sadd.s32 %s197, 1
      %s199 = scalar_select %p196, %s197, %s198
      %p202 = pneg %p196
      %p203 = scmp.eq.s32.totalorder %s19, 1
      %p204 = por %p202, %p203
      %p205 = scmp.ne.s32.totalorder %s197, %s200
      %p206 = scmp.eq.s32.totalorder %s19, 0
      %p207 = por %p205, %p206
      %p208 = scmp.ne.s32.totalorder %s197, %s200
      %p209 = scmp.eq.s32.totalorder %s24, 1
      %p210 = por %p208, %p209
      %p211 = scmp.ne.s32.totalorder %s200, %s201
      %p212 = scmp.eq.s32.totalorder %s24, 0
      %p213 = por %p211, %p212
      %p214 = scmp.ne.s32.totalorder %s200, %s201
      %p215 = scmp.eq.s32.totalorder %s25, 1
      %p216 = por %p214, %p215
      %p218 = scmp.ne.s32.totalorder %s201, %s217
      %p219 = scmp.eq.s32.totalorder %s25, 0
      %p220 = por %p218, %p219
      %s221 = ssub.s32 %s27, %s34
      %p222 = scmp.eq.s32.totalorder %s221, 0
      %s224 = sadd.s32 %s223, 1
      %s225 = scalar_select %p222, %s223, %s224
      %p228 = pneg %p222
      %p229 = scmp.eq.s32.totalorder %s19, 1
      %p230 = por %p228, %p229
      %p231 = scmp.ne.s32.totalorder %s223, %s226
      %p232 = scmp.eq.s32.totalorder %s19, 0
      %p233 = por %p231, %p232
      %p234 = scmp.ne.s32.totalorder %s223, %s226
      %p235 = scmp.eq.s32.totalorder %s24, 1
      %p236 = por %p234, %p235
      %p237 = scmp.ne.s32.totalorder %s226, %s227
      %p238 = scmp.eq.s32.totalorder %s24, 0
      %p239 = por %p237, %p238
      %p240 = scmp.ne.s32.totalorder %s226, %s227
      %p241 = scmp.eq.s32.totalorder %s25, 1
      %p242 = por %p240, %p241
      %p244 = scmp.ne.s32.totalorder %s227, %s243
      %p245 = scmp.eq.s32.totalorder %s25, 0
      %p246 = por %p244, %p245
      %p247 = scmp.le.s32.totalorder 1, %s19
      %p248 = scmp.lt.s32.totalorder %s19, 3
      %p249 = pnand %p247, %p248
      %p250 = pneg %p249
      // Predicated region
      $region9: #{tpu_custom_call.1} parent=5 // pred_check
        _
      $region10: #{tpu_custom_call.1} parent=5 // pred_check_branch
        %252 = sbr.rel (%p249) target = $region12
      $region11: #{tpu_custom_call.1} parent=5 // pred_region
        %s253 = ssub.s32 %s19, 1
        // Predicated region
        $region13: #{tpu_custom_call.1} parent=11 // pred_check
          %p254 = pneg %p57
        $region14: #{tpu_custom_call.1} parent=11 // pred_check_branch
          %256 = sbr.rel (%p254) target = $region16
        $region15: #{tpu_custom_call.1} parent=11 // pred_region
          %s257 = smul.u32 4, %s29
          %s259 = ssub.s32 512, 512
          %260 = vsyncadd [#allocation6], %s259
          %s261 = smul.addr %s257, 128
          %s262 = scalar_lea.hbm %s1, %s261
          %s263 = sshll.u32 [#allocation5], 4
          %s264 = int_to_ptr.vmem [resolvable:$true] %s263
          %269 = dma.hbm_to_vmem [thread:$0]  %s262, 512, %s264, [#allocation6], 128, 128, 8
        $region16: #{tpu_custom_call.1} parent=11 // pred_fallthru
          _
        // Predicated region
        $region17: #{tpu_custom_call.1} parent=11 // pred_check
          %p270 = pneg %p83
        $region18: #{tpu_custom_call.1} parent=11 // pred_check_branch
          %272 = sbr.rel (%p270) target = $region20
        $region19: #{tpu_custom_call.1} parent=11 // pred_region
          %s273 = smul.u32 16, %s29
          %p274 = scmp.lt.s32.totalorder %s273, 15
          %s275 = scalar_select %p274, %s273, 15
          %s276 = smul.addr %s275, 8
          %s277 = scalar_lea.vmem %s2, %s276
          %s278 = smul.u32 16, %s29
        $region20: #{tpu_custom_call.1} parent=11 // pred_fallthru
          _
      $region12: #{tpu_custom_call.1} parent=5 // pred_fallthru
        _
      %p279 = scmp.lt.s32.totalorder %s19, 2
      // Predicated region
      $region21: #{tpu_custom_call.1} parent=5 // pred_check
        %p280 = pneg %p279
      $region22: #{tpu_custom_call.1} parent=5 // pred_check_branch
        %282 = sbr.rel (%p280) target = $region24
      $region23: #{tpu_custom_call.1} parent=5 // pred_region
        // Predicated region
        $region25: #{tpu_custom_call.1} parent=23 // pred_check
          %p283 = pneg %p103
        $region26: #{tpu_custom_call.1} parent=23 // pred_check_branch
          %285 = sbr.rel (%p283) target = $region28
        $region27: #{tpu_custom_call.1} parent=23 // pred_region
          %p286 = scmp.lt.s32.totalorder %s26, 1
          %s287 = scalar_select %p286, %s26, 1
          %s288 = smul.addr %s287, 16
          %s289 = smul.addr %s288, 4
          %s290 = scalar_lea.vmem %s3, %s289
        $region28: #{tpu_custom_call.1} parent=23 // pred_fallthru
          _
        // Predicated region
        $region29: #{tpu_custom_call.1} parent=23 // pred_check
          %p291 = pneg %p129
        $region30: #{tpu_custom_call.1} parent=23 // pred_check_branch
          %293 = sbr.rel (%p291) target = $region32
        $region31: #{tpu_custom_call.1} parent=23 // pred_region
          %p294 = scmp.lt.s32.totalorder %s26, 1
          %s295 = scalar_select %p294, %s26, 1
          %s296 = scalar_lea.vmem %s4, %s295
        $region32: #{tpu_custom_call.1} parent=23 // pred_fallthru
          _
        // Predicated region
        $region33: #{tpu_custom_call.1} parent=23 // pred_check
          %p297 = pneg %p155
        $region34: #{tpu_custom_call.1} parent=23 // pred_check_branch
          %299 = sbr.rel (%p297) target = $region36
        $region35: #{tpu_custom_call.1} parent=23 // pred_region
          %s300 = sand.u32 %s19, 1
          %s301 = scalar_lea.sflag [#allocation9], %s300
          %s302 = sand.u32 %s145, 1
          %s303 = smul.addr %s302, 64
          %s304 = scalar_lea.vmem [#allocation8], %s303
          %s306 = ssub.s32 1024, 1024
          %307 = vsyncadd %s301, %s306
          %s308 = smul.addr %s26, 16
          %s309 = smul.addr %s308, 64
          %s310 = scalar_lea.hbm %s5, %s309
          %s311 = sshll.u32 %s304, 4
          %s312 = int_to_ptr.vmem [resolvable:$true] %s311
          %317 = dma.hbm_to_vmem [thread:$0]  %s310, 1024, %s312, %s301, 64, 64, 4
        $region36: #{tpu_custom_call.1} parent=23 // pred_fallthru
          _
        // Predicated region
        $region37: #{tpu_custom_call.1} parent=23 // pred_check
          %p318 = pneg %p181
        $region38: #{tpu_custom_call.1} parent=23 // pred_check_branch
          %320 = sbr.rel (%p318) target = $region40
        $region39: #{tpu_custom_call.1} parent=23 // pred_region
          %s321 = sand.u32 %s19, 1
          %s322 = scalar_lea.sflag [#allocation9], %s321
          %s323 = sand.u32 %s171, 1
          %s324 = smul.addr %s323, 64
          %s325 = scalar_lea.vmem [#allocation10], %s324
          %s327 = ssub.s32 1024, 1024
          %328 = vsyncadd %s322, %s327
          %s329 = smul.addr %s26, 16
          %s330 = smul.addr %s329, 64
          %s331 = scalar_lea.hbm %s6, %s330
          %s332 = sshll.u32 %s325, 4
          %s333 = int_to_ptr.vmem [resolvable:$true] %s332
          %338 = dma.hbm_to_vmem [thread:$0]  %s331, 1024, %s333, %s322, 64, 64, 4
        $region40: #{tpu_custom_call.1} parent=23 // pred_fallthru
          _
        // Predicated region
        $region41: #{tpu_custom_call.1} parent=23 // pred_check
          %p339 = pneg %p207
        $region42: #{tpu_custom_call.1} parent=23 // pred_check_branch
          %341 = sbr.rel (%p339) target = $region44
        $region43: #{tpu_custom_call.1} parent=23 // pred_region
          %p342 = scmp.lt.s32.totalorder %s26, 1
          %s343 = scalar_select %p342, %s26, 1
          %s344 = scalar_lea.vmem %s7, %s343
        $region44: #{tpu_custom_call.1} parent=23 // pred_fallthru
          _
      $region24: #{tpu_custom_call.1} parent=5 // pred_fallthru
        _
      %p345 = scmp.le.s32.totalorder 1, %s19
      %p346 = scmp.lt.s32.totalorder %s19, 3
      %p347 = pnand %p345, %p346
      %p348 = pneg %p347
      // Predicated region
      $region45: #{tpu_custom_call.1} parent=5 // pred_check
        _
      $region46: #{tpu_custom_call.1} parent=5 // pred_check_branch
        %350 = sbr.rel (%p347) target = $region48
      $region47: #{tpu_custom_call.1} parent=5 // pred_region
        %s351 = ssub.s32 %s19, 1
        // Predicated region
        $region49: #{tpu_custom_call.1} parent=47 // pred_check
          %p352 = pneg %p57
        $region50: #{tpu_custom_call.1} parent=47 // pred_check_branch
          %354 = sbr.rel (%p352) target = $region52
        $region51: #{tpu_custom_call.1} parent=47 // pred_region
          %355 = dma.done [#allocation6], 512
        $region52: #{tpu_custom_call.1} parent=47 // pred_fallthru
          _
        %s356 = sand.u32 %s24, 1
        %s357 = scalar_lea.sflag [#allocation9], %s356
        %s358 = sand.u32 %s148, 1
        %s359 = smul.addr %s358, 64
        %s360 = scalar_lea.vmem [#allocation8], %s359
        // Predicated region
        $region53: #{tpu_custom_call.1} parent=47 // pred_check
          %p361 = pneg %p161
        $region54: #{tpu_custom_call.1} parent=47 // pred_check_branch
          %363 = sbr.rel (%p361) target = $region56
        $region55: #{tpu_custom_call.1} parent=47 // pred_region
          %364 = dma.done %s357, 1024
        $region56: #{tpu_custom_call.1} parent=47 // pred_fallthru
          _
        %s365 = sand.u32 %s24, 1
        %s366 = scalar_lea.sflag [#allocation9], %s365
        %s367 = sand.u32 %s174, 1
        %s368 = smul.addr %s367, 64
        %s369 = scalar_lea.vmem [#allocation10], %s368
        // Predicated region
        $region57: #{tpu_custom_call.1} parent=47 // pred_check
          %p370 = pneg %p187
        $region58: #{tpu_custom_call.1} parent=47 // pred_check_branch
          %372 = sbr.rel (%p370) target = $region60
        $region59: #{tpu_custom_call.1} parent=47 // pred_region
          %373 = dma.done %s366, 1024
        $region60: #{tpu_custom_call.1} parent=47 // pred_fallthru
          _
        %p374 = pneg %p57
        %p375 = pneg %p54
        %s376 = smul.u32 16, %s29
        %p377 = scmp.lt.s32.totalorder %s376, 15
        %s378 = scalar_select %p377, %s376, 15
        %s379 = smul.addr %s378, 8
        %s380 = scalar_lea.vmem %s2, %s379
        %p381 = pneg %p83
        %p382 = pneg %p80
        %p383 = scmp.lt.s32.totalorder %s28, 1
        %s384 = scalar_select %p383, %s28, 1
        %s385 = smul.addr %s384, 16
        %s386 = smul.addr %s385, 4
        %s387 = scalar_lea.vmem %s3, %s386
        %p388 = pneg %p109
        %p389 = pneg %p106
        %p390 = scmp.lt.s32.totalorder %s28, 1
        %s391 = scalar_select %p390, %s28, 1
        %s392 = scalar_lea.vmem %s4, %s391
        %p393 = pneg %p135
        %p394 = pneg %p132
        %s395 = sand.u32 %s24, 1
        %s396 = scalar_lea.sflag [#allocation9], %s395
        %s397 = sand.u32 %s148, 1
        %s398 = smul.addr %s397, 64
        %s399 = scalar_lea.vmem [#allocation8], %s398
        %p400 = pneg %p161
        %p401 = pneg %p158
        %s402 = sand.u32 %s24, 1
        %s403 = scalar_lea.sflag [#allocation9], %s402
        %s404 = sand.u32 %s174, 1
        %s405 = smul.addr %s404, 64
        %s406 = scalar_lea.vmem [#allocation10], %s405
        %p407 = pneg %p187
        %p408 = pneg %p184
        %p409 = scmp.lt.s32.totalorder %s28, 1
        %s410 = scalar_select %p409, %s28, 1
        %s411 = scalar_lea.vmem %s7, %s410
        %p412 = pneg %p213
        %p413 = pneg %p210
        %p414 = pneg %p239
        %p415 = pneg %p236
        %s416 = smul.u32 4, %s29
        %s417 = smul.u32 16, %s29
        %p418 = scmp.lt.s32.totalorder %s417, 15
        %s419 = scalar_select %p418, %s417, 15
        %s420 = smul.addr %s419, 8
        %s421 = scalar_lea.vmem %s2, %s420
        %s422 = smul.u32 16, %s29
        %p423 = scmp.lt.s32.totalorder %s28, 1
        %s424 = scalar_select %p423, %s28, 1
        %s425 = smul.addr %s424, 16
        %s426 = smul.addr %s425, 4
        %s427 = scalar_lea.vmem %s3, %s426
        %p428 = scmp.lt.s32.totalorder %s28, 1
        %s429 = scalar_select %p428, %s28, 1
        %s430 = scalar_lea.vmem %s4, %s429
        %p431 = scmp.lt.s32.totalorder %s28, 1
        %s432 = scalar_select %p431, %s28, 1
        %s433 = scalar_lea.vmem %s7, %s432
        %s434 = smul.u32 16, %s29
        %s436 = smul.u32 %s29, 128
        %p437 = scmp.eq.s32.totalorder %s28, 0
        %p438 = scmp.eq.s32.totalorder %s29, 0
        %p439 = pnand %p437, %p438
        %p440 = pneg %p439
        // Predicated region
        $region61: #{tpu_custom_call.1} parent=47 // pred_check
          _
        $region62: #{tpu_custom_call.1} parent=47 // pred_check_branch
          %442 = sbr.rel (%p439) target = $region64
        $region63: #{tpu_custom_call.1} parent=47 // pred_region
          // Predicated region
          $region65: #{tpu_custom_call.1} parent=63 // pred_check
            _
          $region66: #{tpu_custom_call.1} parent=63 // pred_check_branch
            %444 = sbr.rel target = $region68
          $region67: #{tpu_custom_call.1} parent=63 // pred_region
            %445 = sst [smem:[#allocation14]] [#allocation13]
            %446 = sst [smem:[#allocation15]] [#allocation12]
          $region68: #{tpu_custom_call.1} parent=63 // pred_fallthru
            _
          %448 = shalt.err (0)
          %s450 = sshll.u32 [#allocation2], 4
          %s451 = int_to_ptr.vmem [resolvable:$true] %s450
          %453 = dma.hbm_to_vmem [thread:$0]  %s0, 1024, %s451, [#allocation4]
          %s454 = smul.u32 4, 16
          %s455 = smul.u32 %s454, 1
          %s456 = sshll.u32 %s455, 4
          %457 = dma.done [#allocation4], %s456
        $region64: #{tpu_custom_call.1} parent=47 // pred_fallthru
          _
        // Predicated region
        $region69: #{tpu_custom_call.1} parent=47 // pred_check
          %p458 = pneg %p438
        $region70: #{tpu_custom_call.1} parent=47 // pred_check_branch
          %460 = sbr.rel (%p458) target = $region72
        $region71: #{tpu_custom_call.1} parent=47 // pred_region
          %v461 = vld [vmem:[#allocation2] sm:$0xf]
          %v462 = vld [vmem:[#allocation2 + $0x4] sm:$0xf]
          %v463 = vld [vmem:[#allocation2 + $0x8] sm:$0xf]
          %v464 = vld [vmem:[#allocation2 + $0xc] sm:$0xf]
          %v465 = vld [vmem:[#allocation2 + $0x10] sm:$0xf]
          %v466 = vld [vmem:[#allocation2 + $0x14] sm:$0xf]
          %v467 = vld [vmem:[#allocation2 + $0x18] sm:$0xf]
          %v468 = vld [vmem:[#allocation2 + $0x1c] sm:$0xf]
          %v469 = vld [vmem:[#allocation2 + $0x20] sm:$0xf]
          %v470 = vld [vmem:[#allocation2 + $0x24] sm:$0xf]
          %v471 = vld [vmem:[#allocation2 + $0x28] sm:$0xf]
          %v472 = vld [vmem:[#allocation2 + $0x2c] sm:$0xf]
          %v473 = vld [vmem:[#allocation2 + $0x30] sm:$0xf]
          %v474 = vld [vmem:[#allocation2 + $0x34] sm:$0xf]
          %v475 = vld [vmem:[#allocation2 + $0x38] sm:$0xf]
          %v476 = vld [vmem:[#allocation2 + $0x3c] sm:$0xf]
          %v477 = vld [vmem:[%s427] sm:$0xf]
          %v478 = vld [vmem:[%s427 + $0x4] sm:$0xf]
          %v479 = vld [vmem:[%s427 + $0x8] sm:$0xf]
          %v480 = vld [vmem:[%s427 + $0xc] sm:$0xf]
          %v481 = vld [vmem:[%s427 + $0x10] sm:$0xf]
          %v482 = vld [vmem:[%s427 + $0x14] sm:$0xf]
          %v483 = vld [vmem:[%s427 + $0x18] sm:$0xf]
          %v484 = vld [vmem:[%s427 + $0x1c] sm:$0xf]
          %v485 = vld [vmem:[%s427 + $0x20] sm:$0xf]
          %v486 = vld [vmem:[%s427 + $0x24] sm:$0xf]
          %v487 = vld [vmem:[%s427 + $0x28] sm:$0xf]
          %v488 = vld [vmem:[%s427 + $0x2c] sm:$0xf]
          %v489 = vld [vmem:[%s427 + $0x30] sm:$0xf]
          %v490 = vld [vmem:[%s427 + $0x34] sm:$0xf]
          %v491 = vld [vmem:[%s427 + $0x38] sm:$0xf]
          %v492 = vld [vmem:[%s427 + $0x3c] sm:$0xf]
          %v493 = vld [vmem:[%s430] sm:$0x1]
          %v495 = vlaneseq
          %v496 = vshrl.u32 %v495, 7
          %v497 = vsub.s32 0, %v496
          %v498 = vrot.slane %v493, %v497
          %v516 = vunpack.c.l.b16 %v461
          %v517 = vunpack.c.l.b16 %v462
          %v518 = vunpack.c.l.b16 %v463
          %v519 = vunpack.c.l.b16 %v464
          %v520 = vunpack.c.l.b16 %v465
          %v521 = vunpack.c.l.b16 %v466
          %v522 = vunpack.c.l.b16 %v467
          %v523 = vunpack.c.l.b16 %v468
          %v524 = vunpack.c.l.b16 %v469
          %v525 = vunpack.c.l.b16 %v470
          %v526 = vunpack.c.l.b16 %v471
          %v527 = vunpack.c.l.b16 %v472
          %v528 = vunpack.c.l.b16 %v473
          %v529 = vunpack.c.l.b16 %v474
          %v530 = vunpack.c.l.b16 %v475
          %v531 = vunpack.c.l.b16 %v476
          %v532 = vpack.c.b16 %v517, %v516
          %v533 = vpack.c.b16 %v519, %v518
          %v534 = vpack.c.b16 %v521, %v520
          %v535 = vpack.c.b16 %v523, %v522
          %v536 = vpack.c.b16 %v525, %v524
          %v537 = vpack.c.b16 %v527, %v526
          %v538 = vpack.c.b16 %v529, %v528
          %v539 = vpack.c.b16 %v531, %v530
          %v564 = vunpack.c.l.b16 %v477
          %v565 = vunpack.c.l.b16 %v478
          %v566 = vunpack.c.l.b16 %v479
          %v567 = vunpack.c.l.b16 %v480
          %v568 = vunpack.c.l.b16 %v481
          %v569 = vunpack.c.l.b16 %v482
          %v570 = vunpack.c.l.b16 %v483
          %v571 = vunpack.c.l.b16 %v484
          %v572 = vunpack.c.l.b16 %v485
          %v573 = vunpack.c.l.b16 %v486
          %v574 = vunpack.c.l.b16 %v487
          %v575 = vunpack.c.l.b16 %v488
          %v576 = vunpack.c.l.b16 %v489
          %v577 = vunpack.c.l.b16 %v490
          %v578 = vunpack.c.l.b16 %v491
          %v579 = vunpack.c.l.b16 %v492
          %v580 = vpack.c.b16 %v565, %v564
          %v581 = vpack.c.b16 %v567, %v566
          %v582 = vpack.c.b16 %v569, %v568
          %v583 = vpack.c.b16 %v571, %v570
          %v584 = vpack.c.b16 %v573, %v572
          %v585 = vpack.c.b16 %v575, %v574
          %v586 = vpack.c.b16 %v577, %v576
          %v587 = vpack.c.b16 %v579, %v578
          %596 = vmatprep.subr.bf16.mxu0 0
          %597 = vmatpush1.bf16.msra.mxu0 %v587
          %598 = vmatprep.subr.bf16.mxu0 0
          %599 = vmatpush1.bf16.msra.mxu0 %v586
          %600 = vmatprep.subr.bf16.mxu0 0
          %601 = vmatpush1.bf16.msra.mxu0 %v585
          %602 = vmatprep.subr.bf16.mxu0 0
          %603 = vmatpush1.bf16.msra.mxu0 %v584
          %604 = vmatprep.subr.bf16.mxu0 0
          %605 = vmatpush1.bf16.msra.mxu0 %v583
          %606 = vmatprep.subr.bf16.mxu0 0
          %607 = vmatpush1.bf16.msra.mxu0 %v582
          %608 = vmatprep.subr.bf16.mxu0 0
          %609 = vmatpush1.bf16.msra.mxu0 %v581
          %610 = vmatprep.subr.bf16.mxu0 0
          %611 = vmatpush1.bf16.msra.mxu0 %v580
          %612 = vmatprep.subr.bf16.mxu0 0
          %613 = vmatpush2.bf16.msra.mxu0 0
          %614 = vmatprep.subr.bf16.mxu0 0
          %615 = vmatpush2.bf16.msra.mxu0 0
          %616 = vmatprep.subr.bf16.mxu0 0
          %617 = vmatpush2.bf16.msra.mxu0 0
          %618 = vmatprep.subr.bf16.mxu0 0
          %619 = vmatpush2.bf16.msra.mxu0 0
          %620 = vmatprep.subr.bf16.mxu0 0
          %621 = vmatpush2.bf16.msra.mxu0 0
          %622 = vmatprep.subr.bf16.mxu0 0
          %623 = vmatpush2.bf16.msra.mxu0 0
          %624 = vmatprep.subr.bf16.mxu0 0
          %625 = vmatpush2.bf16.msra.mxu0 0
          %626 = vmatprep.subr.bf16.mxu0 0
          %627 = vmatpush2.bf16.msra.mxu0 0
          %628 = vmatprep.mubr.bf16.mxu0 0
          %629 = vmatmul.mubr.bf16.gmra.mxu0 %v532
          %v630 = vpop.f32.mrf.mxu0
          %v631 = vadd.f32 %v498, %v630
          %v632 = vpop.f32.mrf.mxu0
          %v633 = vpop.f32.mrf.mxu0
          %v634 = vadd.f32 %v498, %v633
          %v635 = vpop.f32.mrf.mxu0
          %636 = vmatprep.mubr.bf16.mxu0 0
          %637 = vmatmul.mubr.bf16.gmra.mxu0 %v533
          %v638 = vpop.f32.mrf.mxu0
          %v639 = vadd.f32 %v498, %v638
          %v640 = vpop.f32.mrf.mxu0
          %v641 = vpop.f32.mrf.mxu0
          %v642 = vadd.f32 %v498, %v641
          %v643 = vpop.f32.mrf.mxu0
          %644 = vmatprep.mubr.bf16.mxu0 0
          %645 = vmatmul.mubr.bf16.gmra.mxu0 %v534
          %v646 = vpop.f32.mrf.mxu0
          %v647 = vadd.f32 %v498, %v646
          %v648 = vpop.f32.mrf.mxu0
          %v649 = vpop.f32.mrf.mxu0
          %v650 = vadd.f32 %v498, %v649
          %v651 = vpop.f32.mrf.mxu0
          %652 = vmatprep.mubr.bf16.mxu0 0
          %653 = vmatmul.mubr.bf16.gmra.mxu0 %v535
          %v654 = vpop.f32.mrf.mxu0
          %v655 = vadd.f32 %v498, %v654
          %v656 = vpop.f32.mrf.mxu0
          %v657 = vpop.f32.mrf.mxu0
          %v658 = vadd.f32 %v498, %v657
          %v659 = vpop.f32.mrf.mxu0
          %660 = vmatprep.mubr.bf16.mxu0 0
          %661 = vmatmul.mubr.bf16.gmra.mxu0 %v536
          %v662 = vpop.f32.mrf.mxu0
          %v663 = vadd.f32 %v498, %v662
          %v664 = vpop.f32.mrf.mxu0
          %v665 = vpop.f32.mrf.mxu0
          %v666 = vadd.f32 %v498, %v665
          %v667 = vpop.f32.mrf.mxu0
          %668 = vmatprep.mubr.bf16.mxu0 0
          %669 = vmatmul.mubr.bf16.gmra.mxu0 %v537
          %v670 = vpop.f32.mrf.mxu0
          %v671 = vadd.f32 %v498, %v670
          %v672 = vpop.f32.mrf.mxu0
          %v673 = vpop.f32.mrf.mxu0
          %v674 = vadd.f32 %v498, %v673
          %v675 = vpop.f32.mrf.mxu0
          %676 = vmatprep.mubr.bf16.mxu0 0
          %677 = vmatmul.mubr.bf16.gmra.mxu0 %v538
          %v678 = vpop.f32.mrf.mxu0
          %v679 = vadd.f32 %v498, %v678
          %v680 = vpop.f32.mrf.mxu0
          %v681 = vpop.f32.mrf.mxu0
          %v682 = vadd.f32 %v498, %v681
          %v683 = vpop.f32.mrf.mxu0
          %684 = vmatprep.mubr.bf16.mxu0 0
          %685 = vmatmul.mubr.bf16.gmra.mxu0 %v539
          %v686 = vpop.f32.mrf.mxu0
          %v687 = vadd.f32 %v498, %v686
          %v688 = vpop.f32.mrf.mxu0
          %v689 = vpop.f32.mrf.mxu0
          %v690 = vadd.f32 %v498, %v689
          %v691 = vpop.f32.mrf.mxu0
          %692 = vdwg.mxu0
          %v693 = vmax.f32 %v631, 0.0
          %v694 = vmax.f32 %v634, 0.0
          %v695 = vmax.f32 %v639, 0.0
          %v696 = vmax.f32 %v642, 0.0
          %v697 = vmax.f32 %v647, 0.0
          %v698 = vmax.f32 %v650, 0.0
          %v699 = vmax.f32 %v655, 0.0
          %v700 = vmax.f32 %v658, 0.0
          %v701 = vmax.f32 %v663, 0.0
          %v702 = vmax.f32 %v666, 0.0
          %v703 = vmax.f32 %v671, 0.0
          %v704 = vmax.f32 %v674, 0.0
          %v705 = vmax.f32 %v679, 0.0
          %v706 = vmax.f32 %v682, 0.0
          %v707 = vmax.f32 %v687, 0.0
          %v708 = vmax.f32 %v690, 0.0
          %v709 = vpack.c.bf16 %v694, %v693
          %v710 = vpack.c.bf16 %v696, %v695
          %v711 = vpack.c.bf16 %v698, %v697
          %v712 = vpack.c.bf16 %v700, %v699
          %v713 = vpack.c.bf16 %v702, %v701
          %v714 = vpack.c.bf16 %v704, %v703
          %v715 = vpack.c.bf16 %v706, %v705
          %v716 = vpack.c.bf16 %v708, %v707
          %v725 = vunpack.c.l.b16 %v709
          %v726 = vunpack.c.h.b16 %v709
          %v727 = vunpack.c.l.b16 %v710
          %v728 = vunpack.c.h.b16 %v710
          %v729 = vunpack.c.l.b16 %v711
          %v730 = vunpack.c.h.b16 %v711
          %v731 = vunpack.c.l.b16 %v712
          %v732 = vunpack.c.h.b16 %v712
          %v733 = vunpack.c.l.b16 %v713
          %v734 = vunpack.c.h.b16 %v713
          %v735 = vunpack.c.l.b16 %v714
          %v736 = vunpack.c.h.b16 %v714
          %v737 = vunpack.c.l.b16 %v715
          %v738 = vunpack.c.h.b16 %v715
          %v739 = vunpack.c.l.b16 %v716
          %v740 = vunpack.c.h.b16 %v716
          %v741 = vpack.c.b16 %v725, %v725
          %v742 = vpack.c.b16 %v726, %v726
          %v743 = vpack.c.b16 %v727, %v727
          %v744 = vpack.c.b16 %v728, %v728
          %v745 = vpack.c.b16 %v729, %v729
          %v746 = vpack.c.b16 %v730, %v730
          %v747 = vpack.c.b16 %v731, %v731
          %v748 = vpack.c.b16 %v732, %v732
          %v749 = vpack.c.b16 %v733, %v733
          %v750 = vpack.c.b16 %v734, %v734
          %v751 = vpack.c.b16 %v735, %v735
          %v752 = vpack.c.b16 %v736, %v736
          %v753 = vpack.c.b16 %v737, %v737
          %v754 = vpack.c.b16 %v738, %v738
          %v755 = vpack.c.b16 %v739, %v739
          %v756 = vpack.c.b16 %v740, %v740
          %773 = vst [vmem:[#allocation3] sm:$0xf] %v741
          %774 = vst [vmem:[#allocation3 + $0x4] sm:$0xf] %v742
          %775 = vst [vmem:[#allocation3 + $0x8] sm:$0xf] %v743
          %776 = vst [vmem:[#allocation3 + $0xc] sm:$0xf] %v744
          %777 = vst [vmem:[#allocation3 + $0x10] sm:$0xf] %v745
          %778 = vst [vmem:[#allocation3 + $0x14] sm:$0xf] %v746
          %779 = vst [vmem:[#allocation3 + $0x18] sm:$0xf] %v747
          %780 = vst [vmem:[#allocation3 + $0x1c] sm:$0xf] %v748
          %781 = vst [vmem:[#allocation3 + $0x20] sm:$0xf] %v749
          %782 = vst [vmem:[#allocation3 + $0x24] sm:$0xf] %v750
          %783 = vst [vmem:[#allocation3 + $0x28] sm:$0xf] %v751
          %784 = vst [vmem:[#allocation3 + $0x2c] sm:$0xf] %v752
          %785 = vst [vmem:[#allocation3 + $0x30] sm:$0xf] %v753
          %786 = vst [vmem:[#allocation3 + $0x34] sm:$0xf] %v754
          %787 = vst [vmem:[#allocation3 + $0x38] sm:$0xf] %v755
          %788 = vst [vmem:[#allocation3 + $0x3c] sm:$0xf] %v756
        $region72: #{tpu_custom_call.1} parent=47 // pred_fallthru
          _
        %v789 = vld [vmem:[#allocation5] sm:$0xff]
        %v790 = vld [vmem:[#allocation5 + $0x8] sm:$0xff]
        %v791 = vld [vmem:[#allocation5 + $0x10] sm:$0xff]
        %v792 = vld [vmem:[#allocation5 + $0x18] sm:$0xff]
        %v793 = vunpack.c.l.s8.bf16 %v789
        %v794 = vunpack.c.h.s8.bf16 %v789
        %v795 = vunpack.c.l.s8.bf16 %v790
        %v796 = vunpack.c.h.s8.bf16 %v790
        %v797 = vunpack.c.l.s8.bf16 %v791
        %v798 = vunpack.c.h.s8.bf16 %v791
        %v799 = vunpack.c.l.s8.bf16 %v792
        %v800 = vunpack.c.h.s8.bf16 %v792
        %v801 = vld [vmem:[#allocation3] sm:$0xf]
        %v802 = vld [vmem:[#allocation3 + $0x4] sm:$0xf]
        %v803 = vld [vmem:[#allocation3 + $0x8] sm:$0xf]
        %v804 = vld [vmem:[#allocation3 + $0xc] sm:$0xf]
        %v805 = vld [vmem:[#allocation3 + $0x10] sm:$0xf]
        %v806 = vld [vmem:[#allocation3 + $0x14] sm:$0xf]
        %v807 = vld [vmem:[#allocation3 + $0x18] sm:$0xf]
        %v808 = vld [vmem:[#allocation3 + $0x1c] sm:$0xf]
        %v809 = vld [vmem:[#allocation3 + $0x20] sm:$0xf]
        %v810 = vld [vmem:[#allocation3 + $0x24] sm:$0xf]
        %v811 = vld [vmem:[#allocation3 + $0x28] sm:$0xf]
        %v812 = vld [vmem:[#allocation3 + $0x2c] sm:$0xf]
        %v813 = vld [vmem:[#allocation3 + $0x30] sm:$0xf]
        %v814 = vld [vmem:[#allocation3 + $0x34] sm:$0xf]
        %v815 = vld [vmem:[#allocation3 + $0x38] sm:$0xf]
        %v816 = vld [vmem:[#allocation3 + $0x3c] sm:$0xf]
        %v833 = vunpack.c.l.b16 %v801
        %v834 = vunpack.c.l.b16 %v802
        %v835 = vunpack.c.l.b16 %v803
        %v836 = vunpack.c.l.b16 %v804
        %v837 = vunpack.c.l.b16 %v805
        %v838 = vunpack.c.l.b16 %v806
        %v839 = vunpack.c.l.b16 %v807
        %v840 = vunpack.c.l.b16 %v808
        %v841 = vunpack.c.l.b16 %v809
        %v842 = vunpack.c.l.b16 %v810
        %v843 = vunpack.c.l.b16 %v811
        %v844 = vunpack.c.l.b16 %v812
        %v845 = vunpack.c.l.b16 %v813
        %v846 = vunpack.c.l.b16 %v814
        %v847 = vunpack.c.l.b16 %v815
        %v848 = vunpack.c.l.b16 %v816
        %v849 = vpack.c.b16 %v834, %v833
        %v850 = vpack.c.b16 %v836, %v835
        %v851 = vpack.c.b16 %v838, %v837
        %v852 = vpack.c.b16 %v840, %v839
        %v853 = vpack.c.b16 %v842, %v841
        %v854 = vpack.c.b16 %v844, %v843
        %v855 = vpack.c.b16 %v846, %v845
        %v856 = vpack.c.b16 %v848, %v847
        %865 = vmatprep.subr.bf16.mxu0 0
        %866 = vmatpush1.bf16.msra.mxu0 %v856
        %867 = vmatprep.subr.bf16.mxu0 0
        %868 = vmatpush1.bf16.msra.mxu0 %v855
        %869 = vmatprep.subr.bf16.mxu0 0
        %870 = vmatpush1.bf16.msra.mxu0 %v854
        %871 = vmatprep.subr.bf16.mxu0 0
        %872 = vmatpush1.bf16.msra.mxu0 %v853
        %873 = vmatprep.subr.bf16.mxu0 0
        %874 = vmatpush1.bf16.msra.mxu0 %v852
        %875 = vmatprep.subr.bf16.mxu0 0
        %876 = vmatpush1.bf16.msra.mxu0 %v851
        %877 = vmatprep.subr.bf16.mxu0 0
        %878 = vmatpush1.bf16.msra.mxu0 %v850
        %879 = vmatprep.subr.bf16.mxu0 0
        %880 = vmatpush1.bf16.msra.mxu0 %v849
        %881 = vmatprep.subr.bf16.mxu0 0
        %882 = vmatpush2.bf16.msra.mxu0 0
        %883 = vmatprep.subr.bf16.mxu0 0
        %884 = vmatpush2.bf16.msra.mxu0 0
        %885 = vmatprep.subr.bf16.mxu0 0
        %886 = vmatpush2.bf16.msra.mxu0 0
        %887 = vmatprep.subr.bf16.mxu0 0
        %888 = vmatpush2.bf16.msra.mxu0 0
        %889 = vmatprep.subr.bf16.mxu0 0
        %890 = vmatpush2.bf16.msra.mxu0 0
        %891 = vmatprep.subr.bf16.mxu0 0
        %892 = vmatpush2.bf16.msra.mxu0 0
        %893 = vmatprep.subr.bf16.mxu0 0
        %894 = vmatpush2.bf16.msra.mxu0 0
        %895 = vmatprep.subr.bf16.mxu0 0
        %896 = vmatpush2.bf16.msra.mxu0 0
        %897 = vmatprep.mubr.bf16.mxu0 0
        %898 = vmatmul.mubr.bf16.gmra.mxu0 %v793
        %v899 = vpop.f32.mrf.mxu0
        %v900 = vadd.f32 0.0, %v899
        %v901 = vpop.f32.mrf.mxu0
        %v902 = vpop.f32.mrf.mxu0
        %v903 = vadd.f32 0.0, %v902
        %v904 = vpop.f32.mrf.mxu0
        %905 = vmatprep.mubr.bf16.mxu0 0
        %906 = vmatmul.mubr.bf16.gmra.mxu0 %v794
        %v907 = vpop.f32.mrf.mxu0
        %v908 = vadd.f32 0.0, %v907
        %v909 = vpop.f32.mrf.mxu0
        %v910 = vpop.f32.mrf.mxu0
        %v911 = vadd.f32 0.0, %v910
        %v912 = vpop.f32.mrf.mxu0
        %913 = vmatprep.mubr.bf16.mxu0 0
        %914 = vmatmul.mubr.bf16.gmra.mxu0 %v795
        %v915 = vpop.f32.mrf.mxu0
        %v916 = vadd.f32 0.0, %v915
        %v917 = vpop.f32.mrf.mxu0
        %v918 = vpop.f32.mrf.mxu0
        %v919 = vadd.f32 0.0, %v918
        %v920 = vpop.f32.mrf.mxu0
        %921 = vmatprep.mubr.bf16.mxu0 0
        %922 = vmatmul.mubr.bf16.gmra.mxu0 %v796
        %v923 = vpop.f32.mrf.mxu0
        %v924 = vadd.f32 0.0, %v923
        %v925 = vpop.f32.mrf.mxu0
        %v926 = vpop.f32.mrf.mxu0
        %v927 = vadd.f32 0.0, %v926
        %v928 = vpop.f32.mrf.mxu0
        %929 = vmatprep.mubr.bf16.mxu0 0
        %930 = vmatmul.mubr.bf16.gmra.mxu0 %v797
        %v931 = vpop.f32.mrf.mxu0
        %v932 = vadd.f32 0.0, %v931
        %v933 = vpop.f32.mrf.mxu0
        %v934 = vpop.f32.mrf.mxu0
        %v935 = vadd.f32 0.0, %v934
        %v936 = vpop.f32.mrf.mxu0
        %937 = vmatprep.mubr.bf16.mxu0 0
        %938 = vmatmul.mubr.bf16.gmra.mxu0 %v798
        %v939 = vpop.f32.mrf.mxu0
        %v940 = vadd.f32 0.0, %v939
        %v941 = vpop.f32.mrf.mxu0
        %v942 = vpop.f32.mrf.mxu0
        %v943 = vadd.f32 0.0, %v942
        %v944 = vpop.f32.mrf.mxu0
        %945 = vmatprep.mubr.bf16.mxu0 0
        %946 = vmatmul.mubr.bf16.gmra.mxu0 %v799
        %v947 = vpop.f32.mrf.mxu0
        %v948 = vadd.f32 0.0, %v947
        %v949 = vpop.f32.mrf.mxu0
        %v950 = vpop.f32.mrf.mxu0
        %v951 = vadd.f32 0.0, %v950
        %v952 = vpop.f32.mrf.mxu0
        %953 = vmatprep.mubr.bf16.mxu0 0
        %954 = vmatmul.mubr.bf16.gmra.mxu0 %v800
        %v955 = vpop.f32.mrf.mxu0
        %v956 = vadd.f32 0.0, %v955
        %v957 = vpop.f32.mrf.mxu0
        %v958 = vpop.f32.mrf.mxu0
        %v959 = vadd.f32 0.0, %v958
        %v960 = vpop.f32.mrf.mxu0
        %961 = vdwg.mxu0
        %v962 = vld [vmem:[%s421] sm:$0xff]
        %v963 = vld [vmem:[%s421 + $0x8] sm:$0xff]
        %v964 = vld [vmem:[%s421 + $0x10] sm:$0xff]
        %v965 = vld [vmem:[%s421 + $0x18] sm:$0xff]
        %v966 = vld [vmem:[%s421 + $0x20] sm:$0xff]
        %v967 = vld [vmem:[%s421 + $0x28] sm:$0xff]
        %v968 = vld [vmem:[%s421 + $0x30] sm:$0xff]
        %v969 = vld [vmem:[%s421 + $0x38] sm:$0xff]
        %v970 = vld [vmem:[%s421 + $0x40] sm:$0xff]
        %v971 = vld [vmem:[%s421 + $0x48] sm:$0xff]
        %v972 = vld [vmem:[%s421 + $0x50] sm:$0xff]
        %v973 = vld [vmem:[%s421 + $0x58] sm:$0xff]
        %v974 = vld [vmem:[%s421 + $0x60] sm:$0xff]
        %v975 = vld [vmem:[%s421 + $0x68] sm:$0xff]
        %v976 = vld [vmem:[%s421 + $0x70] sm:$0xff]
        %v977 = vld [vmem:[%s421 + $0x78] sm:$0xff]
        %979 = vset.pattern.permute.xlu0 0
        %980 = vperm.xlu0 %979, %v962
        %v981 = vpop.permute.xlu0 %980
        %984 = vset.pattern.permute.xlu0 0
        %985 = vperm.xlu0 %984, %v963
        %v986 = vpop.permute.xlu0 %985
        %989 = vset.pattern.permute.xlu0 0
        %990 = vperm.xlu0 %989, %v964
        %v991 = vpop.permute.xlu0 %990
        %994 = vset.pattern.permute.xlu0 0
        %995 = vperm.xlu0 %994, %v965
        %v996 = vpop.permute.xlu0 %995
        %999 = vset.pattern.permute.xlu0 0
        %1000 = vperm.xlu0 %999, %v966
        %v1001 = vpop.permute.xlu0 %1000
        %1004 = vset.pattern.permute.xlu0 0
        %1005 = vperm.xlu0 %1004, %v967
        %v1006 = vpop.permute.xlu0 %1005
        %1009 = vset.pattern.permute.xlu0 0
        %1010 = vperm.xlu0 %1009, %v968
        %v1011 = vpop.permute.xlu0 %1010
        %1014 = vset.pattern.permute.xlu0 0
        %1015 = vperm.xlu0 %1014, %v969
        %v1016 = vpop.permute.xlu0 %1015
        %1019 = vset.pattern.permute.xlu0 0
        %1020 = vperm.xlu0 %1019, %v970
        %v1021 = vpop.permute.xlu0 %1020
        %1024 = vset.pattern.permute.xlu0 0
        %1025 = vperm.xlu0 %1024, %v971
        %v1026 = vpop.permute.xlu0 %1025
        %1029 = vset.pattern.permute.xlu0 0
        %1030 = vperm.xlu0 %1029, %v972
        %v1031 = vpop.permute.xlu0 %1030
        %1034 = vset.pattern.permute.xlu0 0
        %1035 = vperm.xlu0 %1034, %v973
        %v1036 = vpop.permute.xlu0 %1035
        %1039 = vset.pattern.permute.xlu0 0
        %1040 = vperm.xlu0 %1039, %v974
        %v1041 = vpop.permute.xlu0 %1040
        %1044 = vset.pattern.permute.xlu0 0
        %1045 = vperm.xlu0 %1044, %v975
        %v1046 = vpop.permute.xlu0 %1045
        %1049 = vset.pattern.permute.xlu0 0
        %1050 = vperm.xlu0 %1049, %v976
        %v1051 = vpop.permute.xlu0 %1050
        %1054 = vset.pattern.permute.xlu0 0
        %1055 = vperm.xlu0 %1054, %v977
        %v1056 = vpop.permute.xlu0 %1055
        %v1058 = vmul.f32 %v900, %v981
        %v1059 = vmul.f32 %v903, %v986
        %v1060 = vmul.f32 %v908, %v991
        %v1061 = vmul.f32 %v911, %v996
        %v1062 = vmul.f32 %v916, %v1001
        %v1063 = vmul.f32 %v919, %v1006
        %v1064 = vmul.f32 %v924, %v1011
        %v1065 = vmul.f32 %v927, %v1016
        %v1066 = vmul.f32 %v932, %v1021
        %v1067 = vmul.f32 %v935, %v1026
        %v1068 = vmul.f32 %v940, %v1031
        %v1069 = vmul.f32 %v943, %v1036
        %v1070 = vmul.f32 %v948, %v1041
        %v1071 = vmul.f32 %v951, %v1046
        %v1072 = vmul.f32 %v956, %v1051
        %v1073 = vmul.f32 %v959, %v1056
        %s1074 = sshra.s32 %s436, 3
        %s1075 = sand.u32 %s436, 7
        %s1076 = smul.addr %s1074, 4
        %s1077 = scalar_lea.vmem [#allocation2], %s1076
        %v1078 = vld [vmem:[%s1077] sm:$0xf]
        %v1079 = vld [vmem:[%s1077 + $0x4] sm:$0xf]
        %v1080 = vld [vmem:[%s1077 + $0x8] sm:$0xf]
        %v1081 = vld [vmem:[%s1077 + $0xc] sm:$0xf]
        %v1082 = vld [vmem:[%s1077 + $0x10] sm:$0xf]
        %v1083 = vld [vmem:[%s1077 + $0x14] sm:$0xf]
        %v1084 = vld [vmem:[%s1077 + $0x18] sm:$0xf]
        %v1085 = vld [vmem:[%s1077 + $0x1c] sm:$0xf]
        %v1086 = vld [vmem:[%s1077 + $0x20] sm:$0xf]
        %v1087 = vld [vmem:[%s1077 + $0x24] sm:$0xf]
        %v1088 = vld [vmem:[%s1077 + $0x28] sm:$0xf]
        %v1089 = vld [vmem:[%s1077 + $0x2c] sm:$0xf]
        %v1090 = vld [vmem:[%s1077 + $0x30] sm:$0xf]
        %v1091 = vld [vmem:[%s1077 + $0x34] sm:$0xf]
        %v1092 = vld [vmem:[%s1077 + $0x38] sm:$0xf]
        %v1093 = vld [vmem:[%s1077 + $0x3c] sm:$0xf]
        %v1094 = vpack.c.bf16 %v1059, %v1058
        %v1095 = vpack.c.bf16 %v1061, %v1060
        %v1096 = vpack.c.bf16 %v1063, %v1062
        %v1097 = vpack.c.bf16 %v1065, %v1064
        %v1098 = vpack.c.bf16 %v1067, %v1066
        %v1099 = vpack.c.bf16 %v1069, %v1068
        %v1100 = vpack.c.bf16 %v1071, %v1070
        %v1101 = vpack.c.bf16 %v1073, %v1072
        %v1102 = vld [vmem:[%s360] sm:$0xf]
        %v1103 = vld [vmem:[%s360 + $0x4] sm:$0xf]
        %v1104 = vld [vmem:[%s360 + $0x8] sm:$0xf]
        %v1105 = vld [vmem:[%s360 + $0xc] sm:$0xf]
        %v1106 = vld [vmem:[%s360 + $0x10] sm:$0xf]
        %v1107 = vld [vmem:[%s360 + $0x14] sm:$0xf]
        %v1108 = vld [vmem:[%s360 + $0x18] sm:$0xf]
        %v1109 = vld [vmem:[%s360 + $0x1c] sm:$0xf]
        %v1110 = vld [vmem:[%s360 + $0x20] sm:$0xf]
        %v1111 = vld [vmem:[%s360 + $0x24] sm:$0xf]
        %v1112 = vld [vmem:[%s360 + $0x28] sm:$0xf]
        %v1113 = vld [vmem:[%s360 + $0x2c] sm:$0xf]
        %v1114 = vld [vmem:[%s360 + $0x30] sm:$0xf]
        %v1115 = vld [vmem:[%s360 + $0x34] sm:$0xf]
        %v1116 = vld [vmem:[%s360 + $0x38] sm:$0xf]
        %v1117 = vld [vmem:[%s360 + $0x3c] sm:$0xf]
        %v1118 = vld [vmem:[%s369] sm:$0xf]
        %v1119 = vld [vmem:[%s369 + $0x4] sm:$0xf]
        %v1120 = vld [vmem:[%s369 + $0x8] sm:$0xf]
        %v1121 = vld [vmem:[%s369 + $0xc] sm:$0xf]
        %v1122 = vld [vmem:[%s369 + $0x10] sm:$0xf]
        %v1123 = vld [vmem:[%s369 + $0x14] sm:$0xf]
        %v1124 = vld [vmem:[%s369 + $0x18] sm:$0xf]
        %v1125 = vld [vmem:[%s369 + $0x1c] sm:$0xf]
        %v1126 = vld [vmem:[%s369 + $0x20] sm:$0xf]
        %v1127 = vld [vmem:[%s369 + $0x24] sm:$0xf]
        %v1128 = vld [vmem:[%s369 + $0x28] sm:$0xf]
        %v1129 = vld [vmem:[%s369 + $0x2c] sm:$0xf]
        %v1130 = vld [vmem:[%s369 + $0x30] sm:$0xf]
        %v1131 = vld [vmem:[%s369 + $0x34] sm:$0xf]
        %v1132 = vld [vmem:[%s369 + $0x38] sm:$0xf]
        %v1133 = vld [vmem:[%s369 + $0x3c] sm:$0xf]
        %v1150 = vunpack.c.l.b16 %v1078
        %v1151 = vunpack.c.l.b16 %v1079
        %v1152 = vunpack.c.l.b16 %v1080
        %v1153 = vunpack.c.l.b16 %v1081
        %v1154 = vunpack.c.l.b16 %v1082
        %v1155 = vunpack.c.l.b16 %v1083
        %v1156 = vunpack.c.l.b16 %v1084
        %v1157 = vunpack.c.l.b16 %v1085
        %v1158 = vunpack.c.l.b16 %v1086
        %v1159 = vunpack.c.l.b16 %v1087
        %v1160 = vunpack.c.l.b16 %v1088
        %v1161 = vunpack.c.l.b16 %v1089
        %v1162 = vunpack.c.l.b16 %v1090
        %v1163 = vunpack.c.l.b16 %v1091
        %v1164 = vunpack.c.l.b16 %v1092
        %v1165 = vunpack.c.l.b16 %v1093
        %v1166 = vpack.c.b16 %v1151, %v1150
        %v1167 = vpack.c.b16 %v1153, %v1152
        %v1168 = vpack.c.b16 %v1155, %v1154
        %v1169 = vpack.c.b16 %v1157, %v1156
        %v1170 = vpack.c.b16 %v1159, %v1158
        %v1171 = vpack.c.b16 %v1161, %v1160
        %v1172 = vpack.c.b16 %v1163, %v1162
        %v1173 = vpack.c.b16 %v1165, %v1164
        %v1198 = vunpack.c.l.b16 %v1118
        %v1199 = vunpack.c.l.b16 %v1119
        %v1200 = vunpack.c.l.b16 %v1120
        %v1201 = vunpack.c.l.b16 %v1121
        %v1202 = vunpack.c.l.b16 %v1122
        %v1203 = vunpack.c.l.b16 %v1123
        %v1204 = vunpack.c.l.b16 %v1124
        %v1205 = vunpack.c.l.b16 %v1125
        %v1206 = vunpack.c.l.b16 %v1126
        %v1207 = vunpack.c.l.b16 %v1127
        %v1208 = vunpack.c.l.b16 %v1128
        %v1209 = vunpack.c.l.b16 %v1129
        %v1210 = vunpack.c.l.b16 %v1130
        %v1211 = vunpack.c.l.b16 %v1131
        %v1212 = vunpack.c.l.b16 %v1132
        %v1213 = vunpack.c.l.b16 %v1133
        %v1214 = vpack.c.b16 %v1199, %v1198
        %v1215 = vpack.c.b16 %v1201, %v1200
        %v1216 = vpack.c.b16 %v1203, %v1202
        %v1217 = vpack.c.b16 %v1205, %v1204
        %v1218 = vpack.c.b16 %v1207, %v1206
        %v1219 = vpack.c.b16 %v1209, %v1208
        %v1220 = vpack.c.b16 %v1211, %v1210
        %v1221 = vpack.c.b16 %v1213, %v1212
        %1230 = vmatprep.subr.bf16.mxu0 0
        %1231 = vmatpush1.bf16.msra.mxu0 %v1221
        %1232 = vmatprep.subr.bf16.mxu0 0
        %1233 = vmatpush1.bf16.msra.mxu0 %v1220
        %1234 = vmatprep.subr.bf16.mxu0 0
        %1235 = vmatpush1.bf16.msra.mxu0 %v1219
        %1236 = vmatprep.subr.bf16.mxu0 0
        %1237 = vmatpush1.bf16.msra.mxu0 %v1218
        %1238 = vmatprep.subr.bf16.mxu0 0
        %1239 = vmatpush1.bf16.msra.mxu0 %v1217
        %1240 = vmatprep.subr.bf16.mxu0 0
        %1241 = vmatpush1.bf16.msra.mxu0 %v1216
        %1242 = vmatprep.subr.bf16.mxu0 0
        %1243 = vmatpush1.bf16.msra.mxu0 %v1215
        %1244 = vmatprep.subr.bf16.mxu0 0
        %1245 = vmatpush1.bf16.msra.mxu0 %v1214
        %1246 = vmatprep.subr.bf16.mxu0 0
        %1247 = vmatpush2.bf16.msra.mxu0 0
        %1248 = vmatprep.subr.bf16.mxu0 0
        %1249 = vmatpush2.bf16.msra.mxu0 0
        %1250 = vmatprep.subr.bf16.mxu0 0
        %1251 = vmatpush2.bf16.msra.mxu0 0
        %1252 = vmatprep.subr.bf16.mxu0 0
        %1253 = vmatpush2.bf16.msra.mxu0 0
        %1254 = vmatprep.subr.bf16.mxu0 0
        %1255 = vmatpush2.bf16.msra.mxu0 0
        %1256 = vmatprep.subr.bf16.mxu0 0
        %1257 = vmatpush2.bf16.msra.mxu0 0
        %1258 = vmatprep.subr.bf16.mxu0 0
        %1259 = vmatpush2.bf16.msra.mxu0 0
        %1260 = vmatprep.subr.bf16.mxu0 0
        %1261 = vmatpush2.bf16.msra.mxu0 0
        %1262 = vmatprep.mubr.bf16.mxu0 0
        %1263 = vmatmul.mubr.bf16.gmra.mxu0 %v1166
        %v1264 = vpop.f32.mrf.mxu0
        %v1265 = vadd.f32 0.0, %v1264
        %v1266 = vpop.f32.mrf.mxu0
        %v1267 = vpop.f32.mrf.mxu0
        %v1268 = vadd.f32 0.0, %v1267
        %v1269 = vpop.f32.mrf.mxu0
        %1270 = vmatprep.mubr.bf16.mxu0 0
        %1271 = vmatmul.mubr.bf16.gmra.mxu0 %v1167
        %v1272 = vpop.f32.mrf.mxu0
        %v1273 = vadd.f32 0.0, %v1272
        %v1274 = vpop.f32.mrf.mxu0
        %v1275 = vpop.f32.mrf.mxu0
        %v1276 = vadd.f32 0.0, %v1275
        %v1277 = vpop.f32.mrf.mxu0
        %1278 = vmatprep.mubr.bf16.mxu0 0
        %1279 = vmatmul.mubr.bf16.gmra.mxu0 %v1168
        %v1280 = vpop.f32.mrf.mxu0
        %v1281 = vadd.f32 0.0, %v1280
        %v1282 = vpop.f32.mrf.mxu0
        %v1283 = vpop.f32.mrf.mxu0
        %v1284 = vadd.f32 0.0, %v1283
        %v1285 = vpop.f32.mrf.mxu0
        %1286 = vmatprep.mubr.bf16.mxu0 0
        %1287 = vmatmul.mubr.bf16.gmra.mxu0 %v1169
        %v1288 = vpop.f32.mrf.mxu0
        %v1289 = vadd.f32 0.0, %v1288
        %v1290 = vpop.f32.mrf.mxu0
        %v1291 = vpop.f32.mrf.mxu0
        %v1292 = vadd.f32 0.0, %v1291
        %v1293 = vpop.f32.mrf.mxu0
        %1294 = vmatprep.mubr.bf16.mxu0 0
        %1295 = vmatmul.mubr.bf16.gmra.mxu0 %v1170
        %v1296 = vpop.f32.mrf.mxu0
        %v1297 = vadd.f32 0.0, %v1296
        %v1298 = vpop.f32.mrf.mxu0
        %v1299 = vpop.f32.mrf.mxu0
        %v1300 = vadd.f32 0.0, %v1299
        %v1301 = vpop.f32.mrf.mxu0
        %1302 = vmatprep.mubr.bf16.mxu0 0
        %1303 = vmatmul.mubr.bf16.gmra.mxu0 %v1171
        %v1304 = vpop.f32.mrf.mxu0
        %v1305 = vadd.f32 0.0, %v1304
        %v1306 = vpop.f32.mrf.mxu0
        %v1307 = vpop.f32.mrf.mxu0
        %v1308 = vadd.f32 0.0, %v1307
        %v1309 = vpop.f32.mrf.mxu0
        %1310 = vmatprep.mubr.bf16.mxu0 0
        %1311 = vmatmul.mubr.bf16.gmra.mxu0 %v1172
        %v1312 = vpop.f32.mrf.mxu0
        %v1313 = vadd.f32 0.0, %v1312
        %v1314 = vpop.f32.mrf.mxu0
        %v1315 = vpop.f32.mrf.mxu0
        %v1316 = vadd.f32 0.0, %v1315
        %v1317 = vpop.f32.mrf.mxu0
        %1318 = vmatprep.mubr.bf16.mxu0 0
        %1319 = vmatmul.mubr.bf16.gmra.mxu0 %v1173
        %v1320 = vpop.f32.mrf.mxu0
        %v1321 = vadd.f32 0.0, %v1320
        %v1322 = vpop.f32.mrf.mxu0
        %v1323 = vpop.f32.mrf.mxu0
        %v1324 = vadd.f32 0.0, %v1323
        %v1325 = vpop.f32.mrf.mxu0
        %1326 = vdwg.mxu0
        %v1343 = vunpack.c.l.b16 %v1102
        %v1344 = vunpack.c.l.b16 %v1103
        %v1345 = vunpack.c.l.b16 %v1104
        %v1346 = vunpack.c.l.b16 %v1105
        %v1347 = vunpack.c.l.b16 %v1106
        %v1348 = vunpack.c.l.b16 %v1107
        %v1349 = vunpack.c.l.b16 %v1108
        %v1350 = vunpack.c.l.b16 %v1109
        %v1351 = vunpack.c.l.b16 %v1110
        %v1352 = vunpack.c.l.b16 %v1111
        %v1353 = vunpack.c.l.b16 %v1112
        %v1354 = vunpack.c.l.b16 %v1113
        %v1355 = vunpack.c.l.b16 %v1114
        %v1356 = vunpack.c.l.b16 %v1115
        %v1357 = vunpack.c.l.b16 %v1116
        %v1358 = vunpack.c.l.b16 %v1117
        %v1359 = vpack.c.b16 %v1344, %v1343
        %v1360 = vpack.c.b16 %v1346, %v1345
        %v1361 = vpack.c.b16 %v1348, %v1347
        %v1362 = vpack.c.b16 %v1350, %v1349
        %v1363 = vpack.c.b16 %v1352, %v1351
        %v1364 = vpack.c.b16 %v1354, %v1353
        %v1365 = vpack.c.b16 %v1356, %v1355
        %v1366 = vpack.c.b16 %v1358, %v1357
        %1375 = vmatprep.subr.bf16.mxu0 0
        %1376 = vmatpush1.bf16.msra.mxu0 %v1366
        %1377 = vmatprep.subr.bf16.mxu0 0
        %1378 = vmatpush1.bf16.msra.mxu0 %v1365
        %1379 = vmatprep.subr.bf16.mxu0 0
        %1380 = vmatpush1.bf16.msra.mxu0 %v1364
        %1381 = vmatprep.subr.bf16.mxu0 0
        %1382 = vmatpush1.bf16.msra.mxu0 %v1363
        %1383 = vmatprep.subr.bf16.mxu0 0
        %1384 = vmatpush1.bf16.msra.mxu0 %v1362
        %1385 = vmatprep.subr.bf16.mxu0 0
        %1386 = vmatpush1.bf16.msra.mxu0 %v1361
        %1387 = vmatprep.subr.bf16.mxu0 0
        %1388 = vmatpush1.bf16.msra.mxu0 %v1360
        %1389 = vmatprep.subr.bf16.mxu0 0
        %1390 = vmatpush1.bf16.msra.mxu0 %v1359
        %1391 = vmatprep.subr.bf16.mxu0 0
        %1392 = vmatpush2.bf16.msra.mxu0 0
        %1393 = vmatprep.subr.bf16.mxu0 0
        %1394 = vmatpush2.bf16.msra.mxu0 0
        %1395 = vmatprep.subr.bf16.mxu0 0
        %1396 = vmatpush2.bf16.msra.mxu0 0
        %1397 = vmatprep.subr.bf16.mxu0 0
        %1398 = vmatpush2.bf16.msra.mxu0 0
        %1399 = vmatprep.subr.bf16.mxu0 0
        %1400 = vmatpush2.bf16.msra.mxu0 0
        %1401 = vmatprep.subr.bf16.mxu0 0
        %1402 = vmatpush2.bf16.msra.mxu0 0
        %1403 = vmatprep.subr.bf16.mxu0 0
        %1404 = vmatpush2.bf16.msra.mxu0 0
        %1405 = vmatprep.subr.bf16.mxu0 0
        %1406 = vmatpush2.bf16.msra.mxu0 0
        %1407 = vmatprep.mubr.bf16.mxu0 0
        %1408 = vmatmul.mubr.bf16.gmra.mxu0 %v1094
        %v1409 = vpop.f32.mrf.mxu0
        %v1410 = vadd.f32 %v1265, %v1409
        %v1411 = vpop.f32.mrf.mxu0
        %v1412 = vpop.f32.mrf.mxu0
        %v1413 = vadd.f32 %v1268, %v1412
        %v1414 = vpop.f32.mrf.mxu0
        %1415 = vmatprep.mubr.bf16.mxu0 0
        %1416 = vmatmul.mubr.bf16.gmra.mxu0 %v1095
        %v1417 = vpop.f32.mrf.mxu0
        %v1418 = vadd.f32 %v1273, %v1417
        %v1419 = vpop.f32.mrf.mxu0
        %v1420 = vpop.f32.mrf.mxu0
        %v1421 = vadd.f32 %v1276, %v1420
        %v1422 = vpop.f32.mrf.mxu0
        %1423 = vmatprep.mubr.bf16.mxu0 0
        %1424 = vmatmul.mubr.bf16.gmra.mxu0 %v1096
        %v1425 = vpop.f32.mrf.mxu0
        %v1426 = vadd.f32 %v1281, %v1425
        %v1427 = vpop.f32.mrf.mxu0
        %v1428 = vpop.f32.mrf.mxu0
        %v1429 = vadd.f32 %v1284, %v1428
        %v1430 = vpop.f32.mrf.mxu0
        %1431 = vmatprep.mubr.bf16.mxu0 0
        %1432 = vmatmul.mubr.bf16.gmra.mxu0 %v1097
        %v1433 = vpop.f32.mrf.mxu0
        %v1434 = vadd.f32 %v1289, %v1433
        %v1435 = vpop.f32.mrf.mxu0
        %v1436 = vpop.f32.mrf.mxu0
        %v1437 = vadd.f32 %v1292, %v1436
        %v1438 = vpop.f32.mrf.mxu0
        %1439 = vmatprep.mubr.bf16.mxu0 0
        %1440 = vmatmul.mubr.bf16.gmra.mxu0 %v1098
        %v1441 = vpop.f32.mrf.mxu0
        %v1442 = vadd.f32 %v1297, %v1441
        %v1443 = vpop.f32.mrf.mxu0
        %v1444 = vpop.f32.mrf.mxu0
        %v1445 = vadd.f32 %v1300, %v1444
        %v1446 = vpop.f32.mrf.mxu0
        %1447 = vmatprep.mubr.bf16.mxu0 0
        %1448 = vmatmul.mubr.bf16.gmra.mxu0 %v1099
        %v1449 = vpop.f32.mrf.mxu0
        %v1450 = vadd.f32 %v1305, %v1449
        %v1451 = vpop.f32.mrf.mxu0
        %v1452 = vpop.f32.mrf.mxu0
        %v1453 = vadd.f32 %v1308, %v1452
        %v1454 = vpop.f32.mrf.mxu0
        %1455 = vmatprep.mubr.bf16.mxu0 0
        %1456 = vmatmul.mubr.bf16.gmra.mxu0 %v1100
        %v1457 = vpop.f32.mrf.mxu0
        %v1458 = vadd.f32 %v1313, %v1457
        %v1459 = vpop.f32.mrf.mxu0
        %v1460 = vpop.f32.mrf.mxu0
        %v1461 = vadd.f32 %v1316, %v1460
        %v1462 = vpop.f32.mrf.mxu0
        %1463 = vmatprep.mubr.bf16.mxu0 0
        %1464 = vmatmul.mubr.bf16.gmra.mxu0 %v1101
        %v1465 = vpop.f32.mrf.mxu0
        %v1466 = vadd.f32 %v1321, %v1465
        %v1467 = vpop.f32.mrf.mxu0
        %v1468 = vpop.f32.mrf.mxu0
        %v1469 = vadd.f32 %v1324, %v1468
        %v1470 = vpop.f32.mrf.mxu0
        %1471 = vdwg.mxu0
        %v1472 = vld [vmem:[%s433] sm:$0x1]
        %v1474 = vlaneseq
        %v1475 = vshrl.u32 %v1474, 7
        %v1476 = vsub.s32 0, %v1475
        %v1477 = vrot.slane %v1472, %v1476
        %v1479 = vadd.f32 %v1410, %v1477
        %v1480 = vadd.f32 %v1413, %v1477
        %v1481 = vadd.f32 %v1418, %v1477
        %v1482 = vadd.f32 %v1421, %v1477
        %v1483 = vadd.f32 %v1426, %v1477
        %v1484 = vadd.f32 %v1429, %v1477
        %v1485 = vadd.f32 %v1434, %v1477
        %v1486 = vadd.f32 %v1437, %v1477
        %v1487 = vadd.f32 %v1442, %v1477
        %v1488 = vadd.f32 %v1445, %v1477
        %v1489 = vadd.f32 %v1450, %v1477
        %v1490 = vadd.f32 %v1453, %v1477
        %v1491 = vadd.f32 %v1458, %v1477
        %v1492 = vadd.f32 %v1461, %v1477
        %v1493 = vadd.f32 %v1466, %v1477
        %v1494 = vadd.f32 %v1469, %v1477
        // Predicated region
        $region73: #{tpu_custom_call.1} parent=47 // pred_check
          %p1495 = pneg %p437
        $region74: #{tpu_custom_call.1} parent=47 // pred_check_branch
          %1497 = sbr.rel (%p1495) target = $region76
        $region75: #{tpu_custom_call.1} parent=47 // pred_region
          %v1498 = vmax.f32 %v1479, 0.0
          %v1499 = vmax.f32 %v1480, 0.0
          %v1500 = vmax.f32 %v1481, 0.0
          %v1501 = vmax.f32 %v1482, 0.0
          %v1502 = vmax.f32 %v1483, 0.0
          %v1503 = vmax.f32 %v1484, 0.0
          %v1504 = vmax.f32 %v1485, 0.0
          %v1505 = vmax.f32 %v1486, 0.0
          %v1506 = vmax.f32 %v1487, 0.0
          %v1507 = vmax.f32 %v1488, 0.0
          %v1508 = vmax.f32 %v1489, 0.0
          %v1509 = vmax.f32 %v1490, 0.0
          %v1510 = vmax.f32 %v1491, 0.0
          %v1511 = vmax.f32 %v1492, 0.0
          %v1512 = vmax.f32 %v1493, 0.0
          %v1513 = vmax.f32 %v1494, 0.0
          %v1514 = vpack.c.bf16 %v1499, %v1498
          %v1515 = vpack.c.bf16 %v1501, %v1500
          %v1516 = vpack.c.bf16 %v1503, %v1502
          %v1517 = vpack.c.bf16 %v1505, %v1504
          %v1518 = vpack.c.bf16 %v1507, %v1506
          %v1519 = vpack.c.bf16 %v1509, %v1508
          %v1520 = vpack.c.bf16 %v1511, %v1510
          %v1521 = vpack.c.bf16 %v1513, %v1512
          %v1530 = vunpack.c.l.b16 %v1514
          %v1531 = vunpack.c.h.b16 %v1514
          %v1532 = vunpack.c.l.b16 %v1515
          %v1533 = vunpack.c.h.b16 %v1515
          %v1534 = vunpack.c.l.b16 %v1516
          %v1535 = vunpack.c.h.b16 %v1516
          %v1536 = vunpack.c.l.b16 %v1517
          %v1537 = vunpack.c.h.b16 %v1517
          %v1538 = vunpack.c.l.b16 %v1518
          %v1539 = vunpack.c.h.b16 %v1518
          %v1540 = vunpack.c.l.b16 %v1519
          %v1541 = vunpack.c.h.b16 %v1519
          %v1542 = vunpack.c.l.b16 %v1520
          %v1543 = vunpack.c.h.b16 %v1520
          %v1544 = vunpack.c.l.b16 %v1521
          %v1545 = vunpack.c.h.b16 %v1521
          %v1546 = vpack.c.b16 %v1530, %v1530
          %v1547 = vpack.c.b16 %v1531, %v1531
          %v1548 = vpack.c.b16 %v1532, %v1532
          %v1549 = vpack.c.b16 %v1533, %v1533
          %v1550 = vpack.c.b16 %v1534, %v1534
          %v1551 = vpack.c.b16 %v1535, %v1535
          %v1552 = vpack.c.b16 %v1536, %v1536
          %v1553 = vpack.c.b16 %v1537, %v1537
          %v1554 = vpack.c.b16 %v1538, %v1538
          %v1555 = vpack.c.b16 %v1539, %v1539
          %v1556 = vpack.c.b16 %v1540, %v1540
          %v1557 = vpack.c.b16 %v1541, %v1541
          %v1558 = vpack.c.b16 %v1542, %v1542
          %v1559 = vpack.c.b16 %v1543, %v1543
          %v1560 = vpack.c.b16 %v1544, %v1544
          %v1561 = vpack.c.b16 %v1545, %v1545
          %1578 = vst [vmem:[%s1077] sm:$0xf] %v1546
          %1579 = vst [vmem:[%s1077 + $0x4] sm:$0xf] %v1547
          %1580 = vst [vmem:[%s1077 + $0x8] sm:$0xf] %v1548
          %1581 = vst [vmem:[%s1077 + $0xc] sm:$0xf] %v1549
          %1582 = vst [vmem:[%s1077 + $0x10] sm:$0xf] %v1550
          %1583 = vst [vmem:[%s1077 + $0x14] sm:$0xf] %v1551
          %1584 = vst [vmem:[%s1077 + $0x18] sm:$0xf] %v1552
          %1585 = vst [vmem:[%s1077 + $0x1c] sm:$0xf] %v1553
          %1586 = vst [vmem:[%s1077 + $0x20] sm:$0xf] %v1554
          %1587 = vst [vmem:[%s1077 + $0x24] sm:$0xf] %v1555
          %1588 = vst [vmem:[%s1077 + $0x28] sm:$0xf] %v1556
          %1589 = vst [vmem:[%s1077 + $0x2c] sm:$0xf] %v1557
          %1590 = vst [vmem:[%s1077 + $0x30] sm:$0xf] %v1558
          %1591 = vst [vmem:[%s1077 + $0x34] sm:$0xf] %v1559
          %1592 = vst [vmem:[%s1077 + $0x38] sm:$0xf] %v1560
          %1593 = vst [vmem:[%s1077 + $0x3c] sm:$0xf] %v1561
          %1594 = vst [vmem:[#allocation11] sm:$0xf] %v1546
          %1595 = vst [vmem:[#allocation11 + $0x4] sm:$0xf] %v1547
          %1596 = vst [vmem:[#allocation11 + $0x8] sm:$0xf] %v1548
          %1597 = vst [vmem:[#allocation11 + $0xc] sm:$0xf] %v1549
          %1598 = vst [vmem:[#allocation11 + $0x10] sm:$0xf] %v1550
          %1599 = vst [vmem:[#allocation11 + $0x14] sm:$0xf] %v1551
          %1600 = vst [vmem:[#allocation11 + $0x18] sm:$0xf] %v1552
          %1601 = vst [vmem:[#allocation11 + $0x1c] sm:$0xf] %v1553
          %1602 = vst [vmem:[#allocation11 + $0x20] sm:$0xf] %v1554
          %1603 = vst [vmem:[#allocation11 + $0x24] sm:$0xf] %v1555
          %1604 = vst [vmem:[#allocation11 + $0x28] sm:$0xf] %v1556
          %1605 = vst [vmem:[#allocation11 + $0x2c] sm:$0xf] %v1557
          %1606 = vst [vmem:[#allocation11 + $0x30] sm:$0xf] %v1558
          %1607 = vst [vmem:[#allocation11 + $0x34] sm:$0xf] %v1559
          %1608 = vst [vmem:[#allocation11 + $0x38] sm:$0xf] %v1560
          %1609 = vst [vmem:[#allocation11 + $0x3c] sm:$0xf] %v1561
        $region76: #{tpu_custom_call.1} parent=47 // pred_fallthru
          _
        %p1610 = scmp.eq.s32.totalorder %s28, 1
        // Predicated region
        $region77: #{tpu_custom_call.1} parent=47 // pred_check
          %p1611 = pneg %p1610
        $region78: #{tpu_custom_call.1} parent=47 // pred_check_branch
          %1613 = sbr.rel (%p1611) target = $region80
        $region79: #{tpu_custom_call.1} parent=47 // pred_region
          %v1614 = vmul.f32 %v1479, %v1479
          %v1615 = vmul.f32 %v1480, %v1480
          %v1616 = vmul.f32 %v1481, %v1481
          %v1617 = vmul.f32 %v1482, %v1482
          %v1618 = vmul.f32 %v1483, %v1483
          %v1619 = vmul.f32 %v1484, %v1484
          %v1620 = vmul.f32 %v1485, %v1485
          %v1621 = vmul.f32 %v1486, %v1486
          %v1622 = vmul.f32 %v1487, %v1487
          %v1623 = vmul.f32 %v1488, %v1488
          %v1624 = vmul.f32 %v1489, %v1489
          %v1625 = vmul.f32 %v1490, %v1490
          %v1626 = vmul.f32 %v1491, %v1491
          %v1627 = vmul.f32 %v1492, %v1492
          %v1628 = vmul.f32 %v1493, %v1493
          %v1629 = vmul.f32 %v1494, %v1494
          %1630 = vadd.xlane.f32.xlu0 %v1614
          %v1631 = vpop.xlane.xlu0 %1630
          %1632 = vadd.xlane.f32.xlu0 %v1615
          %v1633 = vpop.xlane.xlu0 %1632
          %1634 = vadd.xlane.f32.xlu0 %v1616
          %v1635 = vpop.xlane.xlu0 %1634
          %1636 = vadd.xlane.f32.xlu0 %v1617
          %v1637 = vpop.xlane.xlu0 %1636
          %1638 = vadd.xlane.f32.xlu0 %v1618
          %v1639 = vpop.xlane.xlu0 %1638
          %1640 = vadd.xlane.f32.xlu0 %v1619
          %v1641 = vpop.xlane.xlu0 %1640
          %1642 = vadd.xlane.f32.xlu0 %v1620
          %v1643 = vpop.xlane.xlu0 %1642
          %1644 = vadd.xlane.f32.xlu0 %v1621
          %v1645 = vpop.xlane.xlu0 %1644
          %1646 = vadd.xlane.f32.xlu0 %v1622
          %v1647 = vpop.xlane.xlu0 %1646
          %1648 = vadd.xlane.f32.xlu0 %v1623
          %v1649 = vpop.xlane.xlu0 %1648
          %1650 = vadd.xlane.f32.xlu0 %v1624
          %v1651 = vpop.xlane.xlu0 %1650
          %1652 = vadd.xlane.f32.xlu0 %v1625
          %v1653 = vpop.xlane.xlu0 %1652
          %1654 = vadd.xlane.f32.xlu0 %v1626
          %v1655 = vpop.xlane.xlu0 %1654
          %1656 = vadd.xlane.f32.xlu0 %v1627
          %v1657 = vpop.xlane.xlu0 %1656
          %1658 = vadd.xlane.f32.xlu0 %v1628
          %v1659 = vpop.xlane.xlu0 %1658
          %1660 = vadd.xlane.f32.xlu0 %v1629
          %v1661 = vpop.xlane.xlu0 %1660
          %v1662 = vmax.f32 %v1631, 1e-24
          %v1663 = vmax.f32 %v1633, 1e-24
          %v1664 = vmax.f32 %v1635, 1e-24
          %v1665 = vmax.f32 %v1637, 1e-24
          %v1666 = vmax.f32 %v1639, 1e-24
          %v1667 = vmax.f32 %v1641, 1e-24
          %v1668 = vmax.f32 %v1643, 1e-24
          %v1669 = vmax.f32 %v1645, 1e-24
          %v1670 = vmax.f32 %v1647, 1e-24
          %v1671 = vmax.f32 %v1649, 1e-24
          %v1672 = vmax.f32 %v1651, 1e-24
          %v1673 = vmax.f32 %v1653, 1e-24
          %v1674 = vmax.f32 %v1655, 1e-24
          %v1675 = vmax.f32 %v1657, 1e-24
          %v1676 = vmax.f32 %v1659, 1e-24
          %v1677 = vmax.f32 %v1661, 1e-24
          %v1678 = vrsqrt.pop %v1662
          %v1679 = vrsqrt.pop %v1663
          %v1680 = vrsqrt.pop %v1664
          %v1681 = vrsqrt.pop %v1665
          %v1682 = vrsqrt.pop %v1666
          %v1683 = vrsqrt.pop %v1667
          %v1684 = vrsqrt.pop %v1668
          %v1685 = vrsqrt.pop %v1669
          %v1686 = vrsqrt.pop %v1670
          %v1687 = vrsqrt.pop %v1671
          %v1688 = vrsqrt.pop %v1672
          %v1689 = vrsqrt.pop %v1673
          %v1690 = vrsqrt.pop %v1674
          %v1691 = vrsqrt.pop %v1675
          %v1692 = vrsqrt.pop %v1676
          %v1693 = vrsqrt.pop %v1677
          %v1694 = vmul.f32 %v1479, %v1678
          %v1695 = vmul.f32 %v1480, %v1679
          %v1696 = vmul.f32 %v1481, %v1680
          %v1697 = vmul.f32 %v1482, %v1681
          %v1698 = vmul.f32 %v1483, %v1682
          %v1699 = vmul.f32 %v1484, %v1683
          %v1700 = vmul.f32 %v1485, %v1684
          %v1701 = vmul.f32 %v1486, %v1685
          %v1702 = vmul.f32 %v1487, %v1686
          %v1703 = vmul.f32 %v1488, %v1687
          %v1704 = vmul.f32 %v1489, %v1688
          %v1705 = vmul.f32 %v1490, %v1689
          %v1706 = vmul.f32 %v1491, %v1690
          %v1707 = vmul.f32 %v1492, %v1691
          %v1708 = vmul.f32 %v1493, %v1692
          %v1709 = vmul.f32 %v1494, %v1693
          %v1710 = vmax.f32 %v1694, 0.0
          %v1711 = vmax.f32 %v1695, 0.0
          %v1712 = vmax.f32 %v1696, 0.0
          %v1713 = vmax.f32 %v1697, 0.0
          %v1714 = vmax.f32 %v1698, 0.0
          %v1715 = vmax.f32 %v1699, 0.0
          %v1716 = vmax.f32 %v1700, 0.0
          %v1717 = vmax.f32 %v1701, 0.0
          %v1718 = vmax.f32 %v1702, 0.0
          %v1719 = vmax.f32 %v1703, 0.0
          %v1720 = vmax.f32 %v1704, 0.0
          %v1721 = vmax.f32 %v1705, 0.0
          %v1722 = vmax.f32 %v1706, 0.0
          %v1723 = vmax.f32 %v1707, 0.0
          %v1724 = vmax.f32 %v1708, 0.0
          %v1725 = vmax.f32 %v1709, 0.0
          %v1726 = vpack.c.bf16 %v1711, %v1710
          %v1727 = vpack.c.bf16 %v1713, %v1712
          %v1728 = vpack.c.bf16 %v1715, %v1714
          %v1729 = vpack.c.bf16 %v1717, %v1716
          %v1730 = vpack.c.bf16 %v1719, %v1718
          %v1731 = vpack.c.bf16 %v1721, %v1720
          %v1732 = vpack.c.bf16 %v1723, %v1722
          %v1733 = vpack.c.bf16 %v1725, %v1724
          %v1742 = vunpack.c.l.b16 %v1726
          %v1743 = vunpack.c.h.b16 %v1726
          %v1744 = vunpack.c.l.b16 %v1727
          %v1745 = vunpack.c.h.b16 %v1727
          %v1746 = vunpack.c.l.b16 %v1728
          %v1747 = vunpack.c.h.b16 %v1728
          %v1748 = vunpack.c.l.b16 %v1729
          %v1749 = vunpack.c.h.b16 %v1729
          %v1750 = vunpack.c.l.b16 %v1730
          %v1751 = vunpack.c.h.b16 %v1730
          %v1752 = vunpack.c.l.b16 %v1731
          %v1753 = vunpack.c.h.b16 %v1731
          %v1754 = vunpack.c.l.b16 %v1732
          %v1755 = vunpack.c.h.b16 %v1732
          %v1756 = vunpack.c.l.b16 %v1733
          %v1757 = vunpack.c.h.b16 %v1733
          %v1758 = vpack.c.b16 %v1742, %v1742
          %v1759 = vpack.c.b16 %v1743, %v1743
          %v1760 = vpack.c.b16 %v1744, %v1744
          %v1761 = vpack.c.b16 %v1745, %v1745
          %v1762 = vpack.c.b16 %v1746, %v1746
          %v1763 = vpack.c.b16 %v1747, %v1747
          %v1764 = vpack.c.b16 %v1748, %v1748
          %v1765 = vpack.c.b16 %v1749, %v1749
          %v1766 = vpack.c.b16 %v1750, %v1750
          %v1767 = vpack.c.b16 %v1751, %v1751
          %v1768 = vpack.c.b16 %v1752, %v1752
          %v1769 = vpack.c.b16 %v1753, %v1753
          %v1770 = vpack.c.b16 %v1754, %v1754
          %v1771 = vpack.c.b16 %v1755, %v1755
          %v1772 = vpack.c.b16 %v1756, %v1756
          %v1773 = vpack.c.b16 %v1757, %v1757
          %1790 = vst [vmem:[#allocation11] sm:$0xf] %v1758
          %1791 = vst [vmem:[#allocation11 + $0x4] sm:$0xf] %v1759
          %1792 = vst [vmem:[#allocation11 + $0x8] sm:$0xf] %v1760
          %1793 = vst [vmem:[#allocation11 + $0xc] sm:$0xf] %v1761
          %1794 = vst [vmem:[#allocation11 + $0x10] sm:$0xf] %v1762
          %1795 = vst [vmem:[#allocation11 + $0x14] sm:$0xf] %v1763
          %1796 = vst [vmem:[#allocation11 + $0x18] sm:$0xf] %v1764
          %1797 = vst [vmem:[#allocation11 + $0x1c] sm:$0xf] %v1765
          %1798 = vst [vmem:[#allocation11 + $0x20] sm:$0xf] %v1766
          %1799 = vst [vmem:[#allocation11 + $0x24] sm:$0xf] %v1767
          %1800 = vst [vmem:[#allocation11 + $0x28] sm:$0xf] %v1768
          %1801 = vst [vmem:[#allocation11 + $0x2c] sm:$0xf] %v1769
          %1802 = vst [vmem:[#allocation11 + $0x30] sm:$0xf] %v1770
          %1803 = vst [vmem:[#allocation11 + $0x34] sm:$0xf] %v1771
          %1804 = vst [vmem:[#allocation11 + $0x38] sm:$0xf] %v1772
          %1805 = vst [vmem:[#allocation11 + $0x3c] sm:$0xf] %v1773
        $region80: #{tpu_custom_call.1} parent=47 // pred_fallthru
          _
        // Predicated region
        $region81: #{tpu_custom_call.1} parent=47 // pred_check
          %p1806 = pneg %p236
        $region82: #{tpu_custom_call.1} parent=47 // pred_check_branch
          %1808 = sbr.rel (%p1806) target = $region84
        $region83: #{tpu_custom_call.1} parent=47 // pred_region
          %s1809 = smul.u32 16, %s29
          %s1811 = ssub.s32 1024, 1024
          %1812 = vsyncadd [#allocation7], %s1811
          %s1813 = smul.addr %s1809, 64
          %s1814 = scalar_lea.hbm %s8, %s1813
          %s1815 = sshll.u32 [#allocation11], 4
          %s1816 = int_to_ptr.vmem [resolvable:$true] %s1815
          %1821 = dma.vmem_to_hbm [thread:$0]  %s1816, 1024, %s1814, [#allocation7], 64, 64, 4
        $region84: #{tpu_custom_call.1} parent=47 // pred_fallthru
          _
        // Predicated region
        $region85: #{tpu_custom_call.1} parent=47 // pred_check
          %p1822 = pneg %p236
        $region86: #{tpu_custom_call.1} parent=47 // pred_check_branch
          %1824 = sbr.rel (%p1822) target = $region88
        $region87: #{tpu_custom_call.1} parent=47 // pred_region
          %1825 = dma.done [#allocation7], 1024
        $region88: #{tpu_custom_call.1} parent=47 // pred_fallthru
          _
      $region48: #{tpu_custom_call.1} parent=5 // pred_fallthru
        _
      %p1826 = scmp.le.s32.totalorder 2, %s19
      // Predicated region
      $region89: #{tpu_custom_call.1} parent=5 // pred_check
        %p1827 = pneg %p1826
      $region90: #{tpu_custom_call.1} parent=5 // pred_check_branch
        %1829 = sbr.rel (%p1827) target = $region92
      $region91: #{tpu_custom_call.1} parent=5 // pred_region
        %s1830 = ssub.s32 %s19, 2
      $region92: #{tpu_custom_call.1} parent=5 // pred_fallthru
        _
    $region6: #{tpu_custom_call.1} parent=1 // loop_footer
      %s23 = sadd.s32 1, %s19
    $region7: #{tpu_custom_call.1} parent=1 // loop_footer_branch
      %18 = sbr.rel target = $region3
    $region8: #{tpu_custom_call.1} parent=1 // loop_exit
      _
    %1831 = vsyncpa [#allocation6], 1
    %s1832 = scalar_lea.sflag [#allocation6], 1
    %1833 = vsyncpa %s1832, 1
    %1834 = vsyncpa [#allocation9], 1
    %s1835 = scalar_lea.sflag [#allocation9], 1
    %1836 = vsyncpa %s1835, 1
    %1837 = vsyncpa [#allocation7], 1
    %s1838 = scalar_lea.sflag [#allocation7], 1
    %1839 = vsyncpa %s1838, 1
  %1840 = vsyncmov [#allocation4]
  %s1841 = vpop.sfrf %1840
  %p1842 = scmp.eq.s32.totalorder %s1841, 0
  %p1843 = pneg %p1842
  %1845 = shalt.err (%p1843)

</llo_original>
